<compile_context>
chip_gen: v5e
topology: v5e:2x2
jax: 0.10.0
libtpu: 0.0.40
codegen_flags: <defaults>
</compile_context>

<pallas_src>
import functools

import jax
import jax.numpy as jnp
from jax.experimental import pallas as pl
from jax.experimental.pallas import tpu as pltpu

COEFF = 12
EPS = 1e-5  # nn.InstanceNorm2d default eps


def _split_channels(channels, num_groups):
    split = [channels // num_groups for _ in range(num_groups)]
    split[0] += channels - sum(split)
    return split


def _pick_c_tile(C, HW, budget_bytes=2 << 20):
    """Largest channel tile (full C, or a multiple-of-8 divisor of C) whose
    f32 (TC, HW) block stays under budget (leaves double-buffering headroom)."""
    if C * HW * 4 <= budget_bytes:
        return C
    best = None
    for tc in range(8, C, 8):
        if C % tc == 0 and tc * HW * 4 <= budget_bytes:
            best = tc
    return best if best is not None else C


def _ap_gap_kernel(x_ref, mask_ref, w_ref, gamma_ref, beta_ref, out_ref,
                   *, K, W, coeff):
    """One (batch, channel-tile) block per grid step.

    x_ref     : (1, TC, HW)  input, spatial flattened onto the lane axis
    mask_ref  : (K*K, HW)    0/1 boundary masks for each shifted window
    w_ref     : (TC, K*K)    depthwise taps, tap index t = dy*K + dx
    gamma_ref : (TC, 1)      InstanceNorm scale
    beta_ref  : (TC, 1)      InstanceNorm shift
    out_ref   : (1, TC, 1)   pooled output
    """
    x = x_ref[0]                                    # (TC, HW) f32
    HW = x.shape[1]
    P = K // 2
    center = P * K + P

    # ---- mixed depthwise conv: K*K statically-unrolled shifted windows ----
    conv = x * w_ref[:, center:center + 1]          # center tap: no shift/mask
    for dy in range(K):
        oy = dy - P
        for dx in range(K):
            ox = dx - P
            if oy == 0 and ox == 0:
                continue
            t = dy * K + dx
            shift = (-(oy * W + ox)) % HW           # static lane rotation
            rolled = pltpu.roll(x, shift=shift, axis=1)        # XLU slot
            valid = mask_ref[t:t + 1, :]                        # (1, HW)
            tap = w_ref[:, t:t + 1]                             # (TC, 1)
            conv = conv + (rolled * valid) * tap

    # ---- InstanceNorm2d(affine=True): one-pass biased stats over HW -------
    inv_n = 1.0 / HW
    mean = jnp.sum(conv, axis=1, keepdims=True) * inv_n         # (TC, 1)
    ex2 = jnp.sum(conv * conv, axis=1, keepdims=True) * inv_n
    var = ex2 - mean * mean
    scale = jax.lax.rsqrt(var + EPS) * gamma_ref[...]           # (TC, 1)
    shift_b = beta_ref[...] - mean * scale
    normed = conv * scale + shift_b                             # (TC, HW)

    # ---- sigmoid*COEFF -> softmax over HW, folded into the pooled scalar --
    # logits lie in (0, COEFF): exp() is safe without max subtraction.
    e = jnp.exp(jax.nn.sigmoid(normed) * coeff)                 # (TC, HW)
    denom = jnp.sum(e, axis=1, keepdims=True)                   # (TC, 1)
    num = jnp.sum(x * e, axis=1, keepdims=True)                 # (TC, 1)
    pooled = num * pl.reciprocal(denom, approx=True)            # (TC, 1)

    out_ref[...] = pooled[None]                                 # (1, TC, 1)


def ap_gap_forward(x, w_full, gamma, beta, *, K, coeff=COEFF, c_tile=None):
    """x: (B, C, H, W) f32; w_full: (C, K, K); gamma/beta: (C,)."""
    B, C, H, W = x.shape
    HW = H * W
    P = K // 2
    KK = K * K

    # Pure layout plumbing (no extra compute passes over the image):
    x3 = x.reshape(B, C, HW)                                    # lane-dense view
    w2 = jnp.reshape(w_full, (C, KK)).astype(jnp.float32)       # 2-D params
    g2 = jnp.reshape(gamma, (C, 1)).astype(jnp.float32)
    b2 = jnp.reshape(beta, (C, 1)).astype(jnp.float32)

    # Boundary masks for the K*K shifted windows (zero-padding semantics);
    # shared by all batches/channels, fetched into VMEM once (constant block).
    rows = jnp.arange(H, dtype=jnp.int32).reshape(H, 1)
    cols = jnp.arange(W, dtype=jnp.int32).reshape(1, W)
    mask_list = []
    for dy in range(K):
        oy = dy - P
        for dx in range(K):
            ox = dx - P
            valid = ((rows + oy >= 0) & (rows + oy < H) &
                     (cols + ox >= 0) & (cols + ox < W))
            mask_list.append(valid.reshape(HW))
    masks = jnp.stack(mask_list, axis=0).astype(jnp.float32)    # (KK, HW)

    TC = c_tile if c_tile is not None else _pick_c_tile(C, HW)
    assert C % TC == 0 and (TC == C or TC % 8 == 0)

    kernel = functools.partial(_ap_gap_kernel, K=K, W=W, coeff=float(coeff))
    out = pl.pallas_call(
        kernel,
        out_shape=jax.ShapeDtypeStruct((B, C, 1), jnp.float32),
        grid=(B, C // TC),
        in_specs=[
            pl.BlockSpec((1, TC, HW), lambda b, c: (b, c, 0)),   # x
            pl.BlockSpec((KK, HW), lambda b, c: (0, 0)),         # boundary masks
            pl.BlockSpec((TC, KK), lambda b, c: (c, 0)),         # conv taps
            pl.BlockSpec((TC, 1), lambda b, c: (c, 0)),          # gamma
            pl.BlockSpec((TC, 1), lambda b, c: (c, 0)),          # beta
        ],
        out_specs=pl.BlockSpec((1, TC, 1), lambda b, c: (b, c, 0)),
        compiler_params=pltpu.CompilerParams(
            dimension_semantics=("parallel", "parallel"),
            vmem_limit_bytes=32 * 1024 * 1024),
    )(x3, masks, w2, g2, b2)
    return out.reshape(B, C, 1, 1)


def ref_forward(x, w_full, gamma, beta, *, K, coeff):
    """Pure-JAX reference (same math, no Pallas)."""
    B, C, H, W = x.shape
    P = K // 2
    xpad = jnp.pad(x, ((0, 0), (0, 0), (P, P), (P, P)))
    conv = jnp.zeros_like(x)
    for dy in range(K):
        for dx in range(K):
            conv = conv + xpad[:, :, dy:dy + H, dx:dx + W] * \
                w_full[None, :, dy, dx, None, None]
    mean = conv.mean(axis=(2, 3), keepdims=True)
    var = ((conv - mean) ** 2).mean(axis=(2, 3), keepdims=True)
    gam = jnp.reshape(gamma, (1, C, 1, 1))
    bet = jnp.reshape(beta, (1, C, 1, 1))
    mask = (conv - mean) / jnp.sqrt(var + EPS) * gam + bet
    wgt = jax.nn.softmax((jax.nn.sigmoid(mask) * coeff).reshape(B, C, -1), axis=2)
    return (x.reshape(B, C, -1) * wgt).sum(axis=2).reshape(B, C, 1, 1)


if __name__ == "__main__":
    key = jax.random.PRNGKey(0)
    B, C, H, W = 2, 4, 16, 16
    kernel_group = (3, 5)          # MDConv mixed kernel sizes
    K = max(kernel_group)

    kx, kw, kg, kb = jax.random.split(key, 4)
    x = jax.random.normal(kx, (B, C, H, W), dtype=jnp.float32)

    # MDConv depthwise weights.
    # NOTE: the PyTorch __init__ zero-fills these (which degenerates AP_gap
    # into plain average pooling); we use small deterministic random values so
    # the whole compute path is exercised.  Smaller per-group kernels are
    # zero-embedded at the center of the KxK tap grid (identical math).
    split = _split_channels(C, len(kernel_group))
    wkeys = jax.random.split(kw, len(kernel_group))
    w_blocks = []
    for i, (cg, k) in enumerate(zip(split, kernel_group)):
        wg = 0.1 * jax.random.normal(wkeys[i], (cg, k, k), dtype=jnp.float32)
        pad = (K - k) // 2
        w_blocks.append(jnp.pad(wg, ((0, 0), (pad, pad), (pad, pad))))
    w_full = jnp.concatenate(w_blocks, axis=0)                    # (C, K, K)

    # InstanceNorm2d affine params (PyTorch default weight=1, bias=0; perturbed
    # deterministically so the affine path is non-trivial).
    gamma = (1.0 + 0.1 * jax.random.normal(kg, (C,))).astype(jnp.float32)
    beta = (0.1 * jax.random.normal(kb, (C,))).astype(jnp.float32)

    out = ap_gap_forward(x, w_full, gamma, beta, K=K, coeff=COEFF)
    out = jax.block_until_ready(out)

    ref = ref_forward(x, w_full, gamma, beta, K=K, coeff=COEFF)
    assert out.shape == (B, C, 1, 1)
    # approx=True reciprocal in the softmax denominator -> allow ~1e-3 rel err.
    assert jnp.allclose(out, ref, rtol=1e-2, atol=1e-3), \
        f"max abs err {jnp.max(jnp.abs(out - ref))}"
    print("KERNEL_OK")
</pallas_src>

<mosaic_0001>
module attributes {stable_mosaic.version = 11 : i64} {
  func.func @_ap_gap_kernel(%arg0: i32, %arg1: i32, %arg2: memref<1x4x256xf32, #tpu.memory_space<vmem>>, %arg3: memref<25x256xf32, #tpu.memory_space<vmem>>, %arg4: memref<4x25xf32, #tpu.memory_space<vmem>>, %arg5: memref<4x1xf32, #tpu.memory_space<vmem>>, %arg6: memref<4x1xf32, #tpu.memory_space<vmem>>, %arg7: memref<1x4x1xf32, #tpu.memory_space<vmem>>) attributes {dimension_semantics = [#tpu.dimension_semantics<parallel>, #tpu.dimension_semantics<parallel>], iteration_bounds = array<i64: 2, 1>, scalar_prefetch = 0 : i64, scratch_operands = 0 : i64, tpu.core_type = #tpu.core_type<tc>, window_params = [{transform_indices = @transform_0, window_bounds = array<i64: 1, 4, 256>}, {pipeline_mode = #tpu.pipeline_mode<synchronous>, transform_indices = @transform_1, window_bounds = array<i64: 25, 256>}, {transform_indices = @transform_2, window_bounds = array<i64: 4, 25>}, {transform_indices = @transform_3, window_bounds = array<i64: 4, 1>}, {transform_indices = @transform_4, window_bounds = array<i64: 4, 1>}, {transform_indices = @transform_5, window_bounds = array<i64: 1, 4, 1>}]} {
    %c0 = arith.constant 0 : index
    %c0_0 = arith.constant 0 : index
    %c0_1 = arith.constant 0 : index
    %0 = vector.load %arg2[%c0, %c0_0, %c0_1] : memref<1x4x256xf32, #tpu.memory_space<vmem>>, vector<1x4x256xf32>
    %1 = vector.shape_cast %0 : vector<1x4x256xf32> to vector<4x256xf32>
    %c0_2 = arith.constant 0 : index
    %c12 = arith.constant 12 : index
    %2 = vector.load %arg4[%c0_2, %c12] : memref<4x25xf32, #tpu.memory_space<vmem>>, vector<4x1xf32>
    %3 = vector.broadcast %2 : vector<4x1xf32> to vector<4x256xf32>
    %4 = arith.mulf %1, %3 : vector<4x256xf32>
    %c34_i32 = arith.constant 34 : i32
    %5 = tpu.dynamic_rotate %1 by %c34_i32 dim 1 : vector<4x256xf32>, i32 -> vector<4x256xf32>
    %c0_3 = arith.constant 0 : index
    %c0_4 = arith.constant 0 : index
    %6 = vector.load %arg3[%c0_3, %c0_4] : memref<25x256xf32, #tpu.memory_space<vmem>>, vector<1x256xf32>
    %c0_5 = arith.constant 0 : index
    %c0_6 = arith.constant 0 : index
    %7 = vector.load %arg4[%c0_5, %c0_6] : memref<4x25xf32, #tpu.memory_space<vmem>>, vector<4x1xf32>
    %8 = vector.broadcast %6 : vector<1x256xf32> to vector<4x256xf32>
    %9 = arith.mulf %5, %8 : vector<4x256xf32>
    %10 = vector.broadcast %7 : vector<4x1xf32> to vector<4x256xf32>
    %11 = arith.mulf %9, %10 : vector<4x256xf32>
    %12 = arith.addf %4, %11 : vector<4x256xf32>
    %c33_i32 = arith.constant 33 : i32
    %13 = tpu.dynamic_rotate %1 by %c33_i32 dim 1 : vector<4x256xf32>, i32 -> vector<4x256xf32>
    %c1 = arith.constant 1 : index
    %c0_7 = arith.constant 0 : index
    %14 = vector.load %arg3[%c1, %c0_7] : memref<25x256xf32, #tpu.memory_space<vmem>>, vector<1x256xf32>
    %c0_8 = arith.constant 0 : index
    %c1_9 = arith.constant 1 : index
    %15 = vector.load %arg4[%c0_8, %c1_9] : memref<4x25xf32, #tpu.memory_space<vmem>>, vector<4x1xf32>
    %16 = vector.broadcast %14 : vector<1x256xf32> to vector<4x256xf32>
    %17 = arith.mulf %13, %16 : vector<4x256xf32>
    %18 = vector.broadcast %15 : vector<4x1xf32> to vector<4x256xf32>
    %19 = arith.mulf %17, %18 : vector<4x256xf32>
    %20 = arith.addf %12, %19 : vector<4x256xf32>
    %c32_i32 = arith.constant 32 : i32
    %21 = tpu.dynamic_rotate %1 by %c32_i32 dim 1 : vector<4x256xf32>, i32 -> vector<4x256xf32>
    %c2 = arith.constant 2 : index
    %c0_10 = arith.constant 0 : index
    %22 = vector.load %arg3[%c2, %c0_10] : memref<25x256xf32, #tpu.memory_space<vmem>>, vector<1x256xf32>
    %c0_11 = arith.constant 0 : index
    %c2_12 = arith.constant 2 : index
    %23 = vector.load %arg4[%c0_11, %c2_12] : memref<4x25xf32, #tpu.memory_space<vmem>>, vector<4x1xf32>
    %24 = vector.broadcast %22 : vector<1x256xf32> to vector<4x256xf32>
    %25 = arith.mulf %21, %24 : vector<4x256xf32>
    %26 = vector.broadcast %23 : vector<4x1xf32> to vector<4x256xf32>
    %27 = arith.mulf %25, %26 : vector<4x256xf32>
    %28 = arith.addf %20, %27 : vector<4x256xf32>
    %c31_i32 = arith.constant 31 : i32
    %29 = tpu.dynamic_rotate %1 by %c31_i32 dim 1 : vector<4x256xf32>, i32 -> vector<4x256xf32>
    %c3 = arith.constant 3 : index
    %c0_13 = arith.constant 0 : index
    %30 = vector.load %arg3[%c3, %c0_13] : memref<25x256xf32, #tpu.memory_space<vmem>>, vector<1x256xf32>
    %c0_14 = arith.constant 0 : index
    %c3_15 = arith.constant 3 : index
    %31 = vector.load %arg4[%c0_14, %c3_15] : memref<4x25xf32, #tpu.memory_space<vmem>>, vector<4x1xf32>
    %32 = vector.broadcast %30 : vector<1x256xf32> to vector<4x256xf32>
    %33 = arith.mulf %29, %32 : vector<4x256xf32>
    %34 = vector.broadcast %31 : vector<4x1xf32> to vector<4x256xf32>
    %35 = arith.mulf %33, %34 : vector<4x256xf32>
    %36 = arith.addf %28, %35 : vector<4x256xf32>
    %c30_i32 = arith.constant 30 : i32
    %37 = tpu.dynamic_rotate %1 by %c30_i32 dim 1 : vector<4x256xf32>, i32 -> vector<4x256xf32>
    %c4 = arith.constant 4 : index
    %c0_16 = arith.constant 0 : index
    %38 = vector.load %arg3[%c4, %c0_16] : memref<25x256xf32, #tpu.memory_space<vmem>>, vector<1x256xf32>
    %c0_17 = arith.constant 0 : index
    %c4_18 = arith.constant 4 : index
    %39 = vector.load %arg4[%c0_17, %c4_18] : memref<4x25xf32, #tpu.memory_space<vmem>>, vector<4x1xf32>
    %40 = vector.broadcast %38 : vector<1x256xf32> to vector<4x256xf32>
    %41 = arith.mulf %37, %40 : vector<4x256xf32>
    %42 = vector.broadcast %39 : vector<4x1xf32> to vector<4x256xf32>
    %43 = arith.mulf %41, %42 : vector<4x256xf32>
    %44 = arith.addf %36, %43 : vector<4x256xf32>
    %c18_i32 = arith.constant 18 : i32
    %45 = tpu.dynamic_rotate %1 by %c18_i32 dim 1 : vector<4x256xf32>, i32 -> vector<4x256xf32>
    %c5 = arith.constant 5 : index
    %c0_19 = arith.constant 0 : index
    %46 = vector.load %arg3[%c5, %c0_19] : memref<25x256xf32, #tpu.memory_space<vmem>>, vector<1x256xf32>
    %c0_20 = arith.constant 0 : index
    %c5_21 = arith.constant 5 : index
    %47 = vector.load %arg4[%c0_20, %c5_21] : memref<4x25xf32, #tpu.memory_space<vmem>>, vector<4x1xf32>
    %48 = vector.broadcast %46 : vector<1x256xf32> to vector<4x256xf32>
    %49 = arith.mulf %45, %48 : vector<4x256xf32>
    %50 = vector.broadcast %47 : vector<4x1xf32> to vector<4x256xf32>
    %51 = arith.mulf %49, %50 : vector<4x256xf32>
    %52 = arith.addf %44, %51 : vector<4x256xf32>
    %c17_i32 = arith.constant 17 : i32
    %53 = tpu.dynamic_rotate %1 by %c17_i32 dim 1 : vector<4x256xf32>, i32 -> vector<4x256xf32>
    %c6 = arith.constant 6 : index
    %c0_22 = arith.constant 0 : index
    %54 = vector.load %arg3[%c6, %c0_22] : memref<25x256xf32, #tpu.memory_space<vmem>>, vector<1x256xf32>
    %c0_23 = arith.constant 0 : index
    %c6_24 = arith.constant 6 : index
    %55 = vector.load %arg4[%c0_23, %c6_24] : memref<4x25xf32, #tpu.memory_space<vmem>>, vector<4x1xf32>
    %56 = vector.broadcast %54 : vector<1x256xf32> to vector<4x256xf32>
    %57 = arith.mulf %53, %56 : vector<4x256xf32>
    %58 = vector.broadcast %55 : vector<4x1xf32> to vector<4x256xf32>
    %59 = arith.mulf %57, %58 : vector<4x256xf32>
    %60 = arith.addf %52, %59 : vector<4x256xf32>
    %c16_i32 = arith.constant 16 : i32
    %61 = tpu.dynamic_rotate %1 by %c16_i32 dim 1 : vector<4x256xf32>, i32 -> vector<4x256xf32>
    %c7 = arith.constant 7 : index
    %c0_25 = arith.constant 0 : index
    %62 = vector.load %arg3[%c7, %c0_25] : memref<25x256xf32, #tpu.memory_space<vmem>>, vector<1x256xf32>
    %c0_26 = arith.constant 0 : index
    %c7_27 = arith.constant 7 : index
    %63 = vector.load %arg4[%c0_26, %c7_27] : memref<4x25xf32, #tpu.memory_space<vmem>>, vector<4x1xf32>
    %64 = vector.broadcast %62 : vector<1x256xf32> to vector<4x256xf32>
    %65 = arith.mulf %61, %64 : vector<4x256xf32>
    %66 = vector.broadcast %63 : vector<4x1xf32> to vector<4x256xf32>
    %67 = arith.mulf %65, %66 : vector<4x256xf32>
    %68 = arith.addf %60, %67 : vector<4x256xf32>
    %c15_i32 = arith.constant 15 : i32
    %69 = tpu.dynamic_rotate %1 by %c15_i32 dim 1 : vector<4x256xf32>, i32 -> vector<4x256xf32>
    %c8 = arith.constant 8 : index
    %c0_28 = arith.constant 0 : index
    %70 = vector.load %arg3[%c8, %c0_28] : memref<25x256xf32, #tpu.memory_space<vmem>>, vector<1x256xf32>
    %c0_29 = arith.constant 0 : index
    %c8_30 = arith.constant 8 : index
    %71 = vector.load %arg4[%c0_29, %c8_30] : memref<4x25xf32, #tpu.memory_space<vmem>>, vector<4x1xf32>
    %72 = vector.broadcast %70 : vector<1x256xf32> to vector<4x256xf32>
    %73 = arith.mulf %69, %72 : vector<4x256xf32>
    %74 = vector.broadcast %71 : vector<4x1xf32> to vector<4x256xf32>
    %75 = arith.mulf %73, %74 : vector<4x256xf32>
    %76 = arith.addf %68, %75 : vector<4x256xf32>
    %c14_i32 = arith.constant 14 : i32
    %77 = tpu.dynamic_rotate %1 by %c14_i32 dim 1 : vector<4x256xf32>, i32 -> vector<4x256xf32>
    %c9 = arith.constant 9 : index
    %c0_31 = arith.constant 0 : index
    %78 = vector.load %arg3[%c9, %c0_31] : memref<25x256xf32, #tpu.memory_space<vmem>>, vector<1x256xf32>
    %c0_32 = arith.constant 0 : index
    %c9_33 = arith.constant 9 : index
    %79 = vector.load %arg4[%c0_32, %c9_33] : memref<4x25xf32, #tpu.memory_space<vmem>>, vector<4x1xf32>
    %80 = vector.broadcast %78 : vector<1x256xf32> to vector<4x256xf32>
    %81 = arith.mulf %77, %80 : vector<4x256xf32>
    %82 = vector.broadcast %79 : vector<4x1xf32> to vector<4x256xf32>
    %83 = arith.mulf %81, %82 : vector<4x256xf32>
    %84 = arith.addf %76, %83 : vector<4x256xf32>
    %c2_i32 = arith.constant 2 : i32
    %85 = tpu.dynamic_rotate %1 by %c2_i32 dim 1 : vector<4x256xf32>, i32 -> vector<4x256xf32>
    %c10 = arith.constant 10 : index
    %c0_34 = arith.constant 0 : index
    %86 = vector.load %arg3[%c10, %c0_34] : memref<25x256xf32, #tpu.memory_space<vmem>>, vector<1x256xf32>
    %c0_35 = arith.constant 0 : index
    %c10_36 = arith.constant 10 : index
    %87 = vector.load %arg4[%c0_35, %c10_36] : memref<4x25xf32, #tpu.memory_space<vmem>>, vector<4x1xf32>
    %88 = vector.broadcast %86 : vector<1x256xf32> to vector<4x256xf32>
    %89 = arith.mulf %85, %88 : vector<4x256xf32>
    %90 = vector.broadcast %87 : vector<4x1xf32> to vector<4x256xf32>
    %91 = arith.mulf %89, %90 : vector<4x256xf32>
    %92 = arith.addf %84, %91 : vector<4x256xf32>
    %c1_i32 = arith.constant 1 : i32
    %93 = tpu.dynamic_rotate %1 by %c1_i32 dim 1 : vector<4x256xf32>, i32 -> vector<4x256xf32>
    %c11 = arith.constant 11 : index
    %c0_37 = arith.constant 0 : index
    %94 = vector.load %arg3[%c11, %c0_37] : memref<25x256xf32, #tpu.memory_space<vmem>>, vector<1x256xf32>
    %c0_38 = arith.constant 0 : index
    %c11_39 = arith.constant 11 : index
    %95 = vector.load %arg4[%c0_38, %c11_39] : memref<4x25xf32, #tpu.memory_space<vmem>>, vector<4x1xf32>
    %96 = vector.broadcast %94 : vector<1x256xf32> to vector<4x256xf32>
    %97 = arith.mulf %93, %96 : vector<4x256xf32>
    %98 = vector.broadcast %95 : vector<4x1xf32> to vector<4x256xf32>
    %99 = arith.mulf %97, %98 : vector<4x256xf32>
    %100 = arith.addf %92, %99 : vector<4x256xf32>
    %c255_i32 = arith.constant 255 : i32
    %101 = tpu.dynamic_rotate %1 by %c255_i32 dim 1 : vector<4x256xf32>, i32 -> vector<4x256xf32>
    %c13 = arith.constant 13 : index
    %c0_40 = arith.constant 0 : index
    %102 = vector.load %arg3[%c13, %c0_40] : memref<25x256xf32, #tpu.memory_space<vmem>>, vector<1x256xf32>
    %c0_41 = arith.constant 0 : index
    %c13_42 = arith.constant 13 : index
    %103 = vector.load %arg4[%c0_41, %c13_42] : memref<4x25xf32, #tpu.memory_space<vmem>>, vector<4x1xf32>
    %104 = vector.broadcast %102 : vector<1x256xf32> to vector<4x256xf32>
    %105 = arith.mulf %101, %104 : vector<4x256xf32>
    %106 = vector.broadcast %103 : vector<4x1xf32> to vector<4x256xf32>
    %107 = arith.mulf %105, %106 : vector<4x256xf32>
    %108 = arith.addf %100, %107 : vector<4x256xf32>
    %c254_i32 = arith.constant 254 : i32
    %109 = tpu.dynamic_rotate %1 by %c254_i32 dim 1 : vector<4x256xf32>, i32 -> vector<4x256xf32>
    %c14 = arith.constant 14 : index
    %c0_43 = arith.constant 0 : index
    %110 = vector.load %arg3[%c14, %c0_43] : memref<25x256xf32, #tpu.memory_space<vmem>>, vector<1x256xf32>
    %c0_44 = arith.constant 0 : index
    %c14_45 = arith.constant 14 : index
    %111 = vector.load %arg4[%c0_44, %c14_45] : memref<4x25xf32, #tpu.memory_space<vmem>>, vector<4x1xf32>
    %112 = vector.broadcast %110 : vector<1x256xf32> to vector<4x256xf32>
    %113 = arith.mulf %109, %112 : vector<4x256xf32>
    %114 = vector.broadcast %111 : vector<4x1xf32> to vector<4x256xf32>
    %115 = arith.mulf %113, %114 : vector<4x256xf32>
    %116 = arith.addf %108, %115 : vector<4x256xf32>
    %c242_i32 = arith.constant 242 : i32
    %117 = tpu.dynamic_rotate %1 by %c242_i32 dim 1 : vector<4x256xf32>, i32 -> vector<4x256xf32>
    %c15 = arith.constant 15 : index
    %c0_46 = arith.constant 0 : index
    %118 = vector.load %arg3[%c15, %c0_46] : memref<25x256xf32, #tpu.memory_space<vmem>>, vector<1x256xf32>
    %c0_47 = arith.constant 0 : index
    %c15_48 = arith.constant 15 : index
    %119 = vector.load %arg4[%c0_47, %c15_48] : memref<4x25xf32, #tpu.memory_space<vmem>>, vector<4x1xf32>
    %120 = vector.broadcast %118 : vector<1x256xf32> to vector<4x256xf32>
    %121 = arith.mulf %117, %120 : vector<4x256xf32>
    %122 = vector.broadcast %119 : vector<4x1xf32> to vector<4x256xf32>
    %123 = arith.mulf %121, %122 : vector<4x256xf32>
    %124 = arith.addf %116, %123 : vector<4x256xf32>
    %c241_i32 = arith.constant 241 : i32
    %125 = tpu.dynamic_rotate %1 by %c241_i32 dim 1 : vector<4x256xf32>, i32 -> vector<4x256xf32>
    %c16 = arith.constant 16 : index
    %c0_49 = arith.constant 0 : index
    %126 = vector.load %arg3[%c16, %c0_49] : memref<25x256xf32, #tpu.memory_space<vmem>>, vector<1x256xf32>
    %c0_50 = arith.constant 0 : index
    %c16_51 = arith.constant 16 : index
    %127 = vector.load %arg4[%c0_50, %c16_51] : memref<4x25xf32, #tpu.memory_space<vmem>>, vector<4x1xf32>
    %128 = vector.broadcast %126 : vector<1x256xf32> to vector<4x256xf32>
    %129 = arith.mulf %125, %128 : vector<4x256xf32>
    %130 = vector.broadcast %127 : vector<4x1xf32> to vector<4x256xf32>
    %131 = arith.mulf %129, %130 : vector<4x256xf32>
    %132 = arith.addf %124, %131 : vector<4x256xf32>
    %c240_i32 = arith.constant 240 : i32
    %133 = tpu.dynamic_rotate %1 by %c240_i32 dim 1 : vector<4x256xf32>, i32 -> vector<4x256xf32>
    %c17 = arith.constant 17 : index
    %c0_52 = arith.constant 0 : index
    %134 = vector.load %arg3[%c17, %c0_52] : memref<25x256xf32, #tpu.memory_space<vmem>>, vector<1x256xf32>
    %c0_53 = arith.constant 0 : index
    %c17_54 = arith.constant 17 : index
    %135 = vector.load %arg4[%c0_53, %c17_54] : memref<4x25xf32, #tpu.memory_space<vmem>>, vector<4x1xf32>
    %136 = vector.broadcast %134 : vector<1x256xf32> to vector<4x256xf32>
    %137 = arith.mulf %133, %136 : vector<4x256xf32>
    %138 = vector.broadcast %135 : vector<4x1xf32> to vector<4x256xf32>
    %139 = arith.mulf %137, %138 : vector<4x256xf32>
    %140 = arith.addf %132, %139 : vector<4x256xf32>
    %c239_i32 = arith.constant 239 : i32
    %141 = tpu.dynamic_rotate %1 by %c239_i32 dim 1 : vector<4x256xf32>, i32 -> vector<4x256xf32>
    %c18 = arith.constant 18 : index
    %c0_55 = arith.constant 0 : index
    %142 = vector.load %arg3[%c18, %c0_55] : memref<25x256xf32, #tpu.memory_space<vmem>>, vector<1x256xf32>
    %c0_56 = arith.constant 0 : index
    %c18_57 = arith.constant 18 : index
    %143 = vector.load %arg4[%c0_56, %c18_57] : memref<4x25xf32, #tpu.memory_space<vmem>>, vector<4x1xf32>
    %144 = vector.broadcast %142 : vector<1x256xf32> to vector<4x256xf32>
    %145 = arith.mulf %141, %144 : vector<4x256xf32>
    %146 = vector.broadcast %143 : vector<4x1xf32> to vector<4x256xf32>
    %147 = arith.mulf %145, %146 : vector<4x256xf32>
    %148 = arith.addf %140, %147 : vector<4x256xf32>
    %c238_i32 = arith.constant 238 : i32
    %149 = tpu.dynamic_rotate %1 by %c238_i32 dim 1 : vector<4x256xf32>, i32 -> vector<4x256xf32>
    %c19 = arith.constant 19 : index
    %c0_58 = arith.constant 0 : index
    %150 = vector.load %arg3[%c19, %c0_58] : memref<25x256xf32, #tpu.memory_space<vmem>>, vector<1x256xf32>
    %c0_59 = arith.constant 0 : index
    %c19_60 = arith.constant 19 : index
    %151 = vector.load %arg4[%c0_59, %c19_60] : memref<4x25xf32, #tpu.memory_space<vmem>>, vector<4x1xf32>
    %152 = vector.broadcast %150 : vector<1x256xf32> to vector<4x256xf32>
    %153 = arith.mulf %149, %152 : vector<4x256xf32>
    %154 = vector.broadcast %151 : vector<4x1xf32> to vector<4x256xf32>
    %155 = arith.mulf %153, %154 : vector<4x256xf32>
    %156 = arith.addf %148, %155 : vector<4x256xf32>
    %c226_i32 = arith.constant 226 : i32
    %157 = tpu.dynamic_rotate %1 by %c226_i32 dim 1 : vector<4x256xf32>, i32 -> vector<4x256xf32>
    %c20 = arith.constant 20 : index
    %c0_61 = arith.constant 0 : index
    %158 = vector.load %arg3[%c20, %c0_61] : memref<25x256xf32, #tpu.memory_space<vmem>>, vector<1x256xf32>
    %c0_62 = arith.constant 0 : index
    %c20_63 = arith.constant 20 : index
    %159 = vector.load %arg4[%c0_62, %c20_63] : memref<4x25xf32, #tpu.memory_space<vmem>>, vector<4x1xf32>
    %160 = vector.broadcast %158 : vector<1x256xf32> to vector<4x256xf32>
    %161 = arith.mulf %157, %160 : vector<4x256xf32>
    %162 = vector.broadcast %159 : vector<4x1xf32> to vector<4x256xf32>
    %163 = arith.mulf %161, %162 : vector<4x256xf32>
    %164 = arith.addf %156, %163 : vector<4x256xf32>
    %c225_i32 = arith.constant 225 : i32
    %165 = tpu.dynamic_rotate %1 by %c225_i32 dim 1 : vector<4x256xf32>, i32 -> vector<4x256xf32>
    %c21 = arith.constant 21 : index
    %c0_64 = arith.constant 0 : index
    %166 = vector.load %arg3[%c21, %c0_64] : memref<25x256xf32, #tpu.memory_space<vmem>>, vector<1x256xf32>
    %c0_65 = arith.constant 0 : index
    %c21_66 = arith.constant 21 : index
    %167 = vector.load %arg4[%c0_65, %c21_66] : memref<4x25xf32, #tpu.memory_space<vmem>>, vector<4x1xf32>
    %168 = vector.broadcast %166 : vector<1x256xf32> to vector<4x256xf32>
    %169 = arith.mulf %165, %168 : vector<4x256xf32>
    %170 = vector.broadcast %167 : vector<4x1xf32> to vector<4x256xf32>
    %171 = arith.mulf %169, %170 : vector<4x256xf32>
    %172 = arith.addf %164, %171 : vector<4x256xf32>
    %c224_i32 = arith.constant 224 : i32
    %173 = tpu.dynamic_rotate %1 by %c224_i32 dim 1 : vector<4x256xf32>, i32 -> vector<4x256xf32>
    %c22 = arith.constant 22 : index
    %c0_67 = arith.constant 0 : index
    %174 = vector.load %arg3[%c22, %c0_67] : memref<25x256xf32, #tpu.memory_space<vmem>>, vector<1x256xf32>
    %c0_68 = arith.constant 0 : index
    %c22_69 = arith.constant 22 : index
    %175 = vector.load %arg4[%c0_68, %c22_69] : memref<4x25xf32, #tpu.memory_space<vmem>>, vector<4x1xf32>
    %176 = vector.broadcast %174 : vector<1x256xf32> to vector<4x256xf32>
    %177 = arith.mulf %173, %176 : vector<4x256xf32>
    %178 = vector.broadcast %175 : vector<4x1xf32> to vector<4x256xf32>
    %179 = arith.mulf %177, %178 : vector<4x256xf32>
    %180 = arith.addf %172, %179 : vector<4x256xf32>
    %c223_i32 = arith.constant 223 : i32
    %181 = tpu.dynamic_rotate %1 by %c223_i32 dim 1 : vector<4x256xf32>, i32 -> vector<4x256xf32>
    %c23 = arith.constant 23 : index
    %c0_70 = arith.constant 0 : index
    %182 = vector.load %arg3[%c23, %c0_70] : memref<25x256xf32, #tpu.memory_space<vmem>>, vector<1x256xf32>
    %c0_71 = arith.constant 0 : index
    %c23_72 = arith.constant 23 : index
    %183 = vector.load %arg4[%c0_71, %c23_72] : memref<4x25xf32, #tpu.memory_space<vmem>>, vector<4x1xf32>
    %184 = vector.broadcast %182 : vector<1x256xf32> to vector<4x256xf32>
    %185 = arith.mulf %181, %184 : vector<4x256xf32>
    %186 = vector.broadcast %183 : vector<4x1xf32> to vector<4x256xf32>
    %187 = arith.mulf %185, %186 : vector<4x256xf32>
    %188 = arith.addf %180, %187 : vector<4x256xf32>
    %c222_i32 = arith.constant 222 : i32
    %189 = tpu.dynamic_rotate %1 by %c222_i32 dim 1 : vector<4x256xf32>, i32 -> vector<4x256xf32>
    %c24 = arith.constant 24 : index
    %c0_73 = arith.constant 0 : index
    %190 = vector.load %arg3[%c24, %c0_73] : memref<25x256xf32, #tpu.memory_space<vmem>>, vector<1x256xf32>
    %c0_74 = arith.constant 0 : index
    %c24_75 = arith.constant 24 : index
    %191 = vector.load %arg4[%c0_74, %c24_75] : memref<4x25xf32, #tpu.memory_space<vmem>>, vector<4x1xf32>
    %192 = vector.broadcast %190 : vector<1x256xf32> to vector<4x256xf32>
    %193 = arith.mulf %189, %192 : vector<4x256xf32>
    %194 = vector.broadcast %191 : vector<4x1xf32> to vector<4x256xf32>
    %195 = arith.mulf %193, %194 : vector<4x256xf32>
    %196 = arith.addf %188, %195 : vector<4x256xf32>
    %cst = arith.constant dense<0.000000e+00> : vector<4xf32>
    %197 = vector.multi_reduction <add>, %196, %cst [1] : vector<4x256xf32> to vector<4xf32>
    %198 = vector.shape_cast %197 : vector<4xf32> to vector<4x1xf32>
    %cst_76 = arith.constant 3.906250e-03 : f32
    %199 = vector.broadcast %cst_76 : f32 to vector<4x1xf32>
    %200 = arith.mulf %198, %199 : vector<4x1xf32>
    %201 = arith.mulf %196, %196 : vector<4x256xf32>
    %cst_77 = arith.constant dense<0.000000e+00> : vector<4xf32>
    %202 = vector.multi_reduction <add>, %201, %cst_77 [1] : vector<4x256xf32> to vector<4xf32>
    %203 = vector.shape_cast %202 : vector<4xf32> to vector<4x1xf32>
    %cst_78 = arith.constant 3.906250e-03 : f32
    %204 = vector.broadcast %cst_78 : f32 to vector<4x1xf32>
    %205 = arith.mulf %203, %204 : vector<4x1xf32>
    %206 = arith.mulf %200, %200 : vector<4x1xf32>
    %207 = arith.subf %205, %206 : vector<4x1xf32>
    %cst_79 = arith.constant 9.99999974E-6 : f32
    %208 = vector.broadcast %cst_79 : f32 to vector<4x1xf32>
    %209 = arith.addf %207, %208 : vector<4x1xf32>
    %210 = math.rsqrt %209 : vector<4x1xf32>
    %c0_80 = arith.constant 0 : index
    %c0_81 = arith.constant 0 : index
    %211 = vector.load %arg5[%c0_80, %c0_81] : memref<4x1xf32, #tpu.memory_space<vmem>>, vector<4x1xf32>
    %212 = arith.mulf %210, %211 : vector<4x1xf32>
    %c0_82 = arith.constant 0 : index
    %c0_83 = arith.constant 0 : index
    %213 = vector.load %arg6[%c0_82, %c0_83] : memref<4x1xf32, #tpu.memory_space<vmem>>, vector<4x1xf32>
    %214 = arith.mulf %200, %212 : vector<4x1xf32>
    %215 = arith.subf %213, %214 : vector<4x1xf32>
    %216 = vector.broadcast %212 : vector<4x1xf32> to vector<4x256xf32>
    %217 = arith.mulf %196, %216 : vector<4x256xf32>
    %218 = vector.broadcast %215 : vector<4x1xf32> to vector<4x256xf32>
    %219 = arith.addf %217, %218 : vector<4x256xf32>
    %220 = arith.negf %219 : vector<4x256xf32>
    %221 = math.exp %220 : vector<4x256xf32>
    %cst_84 = arith.constant 1.000000e+00 : f32
    %222 = vector.broadcast %cst_84 : f32 to vector<4x256xf32>
    %223 = arith.addf %222, %221 : vector<4x256xf32>
    %224 = arith.divf %222, %223 : vector<4x256xf32>
    %cst_85 = arith.constant 1.200000e+01 : f32
    %225 = vector.broadcast %cst_85 : f32 to vector<4x256xf32>
    %226 = arith.mulf %224, %225 : vector<4x256xf32>
    %227 = math.exp %226 : vector<4x256xf32>
    %cst_86 = arith.constant dense<0.000000e+00> : vector<4xf32>
    %228 = vector.multi_reduction <add>, %227, %cst_86 [1] : vector<4x256xf32> to vector<4xf32>
    %229 = vector.shape_cast %228 : vector<4xf32> to vector<4x1xf32>
    %230 = arith.mulf %1, %227 : vector<4x256xf32>
    %cst_87 = arith.constant dense<0.000000e+00> : vector<4xf32>
    %231 = vector.multi_reduction <add>, %230, %cst_87 [1] : vector<4x256xf32> to vector<4xf32>
    %232 = vector.shape_cast %231 : vector<4xf32> to vector<4x1xf32>
    %233 = tpu.reciprocal %229 {approx = true} : vector<4x1xf32> -> vector<4x1xf32>
    %234 = arith.mulf %232, %233 : vector<4x1xf32>
    %235 = vector.shape_cast %234 : vector<4x1xf32> to vector<1x4x1xf32>
    %c0_88 = arith.constant 0 : index
    %c0_89 = arith.constant 0 : index
    %c0_90 = arith.constant 0 : index
    %236 = vector.load %arg7[%c0_88, %c0_89, %c0_90] : memref<1x4x1xf32, #tpu.memory_space<vmem>>, vector<1x4x1xf32>
    tpu.vector_store %arg7[%c0_88, %c0_89, %c0_90], %235 {strides = array<i32>} : memref<1x4x1xf32, #tpu.memory_space<vmem>>, vector<1x4x1xf32>,
    return
  }
  func.func @transform_0(%arg0: i32, %arg1: i32) -> (i32, i32, i32) {
    %c0_i32 = arith.constant 0 : i32
    %c0_i32_0 = arith.constant 0 : i32
    return %arg0, %arg1, %c0_i32 : i32, i32, i32
  }
  func.func @transform_1(%arg0: i32, %arg1: i32) -> (i32, i32) {
    %c0_i32 = arith.constant 0 : i32
    %c0_i32_0 = arith.constant 0 : i32
    %c0_i32_1 = arith.constant 0 : i32
    return %c0_i32, %c0_i32_0 : i32, i32
  }
  func.func @transform_2(%arg0: i32, %arg1: i32) -> (i32, i32) {
    %c0_i32 = arith.constant 0 : i32
    %c0_i32_0 = arith.constant 0 : i32
    return %arg1, %c0_i32 : i32, i32
  }
  func.func @transform_3(%arg0: i32, %arg1: i32) -> (i32, i32) {
    %c0_i32 = arith.constant 0 : i32
    %c0_i32_0 = arith.constant 0 : i32
    return %arg1, %c0_i32 : i32, i32
  }
  func.func @transform_4(%arg0: i32, %arg1: i32) -> (i32, i32) {
    %c0_i32 = arith.constant 0 : i32
    %c0_i32_0 = arith.constant 0 : i32
    return %arg1, %c0_i32 : i32, i32
  }
  func.func @transform_5(%arg0: i32, %arg1: i32) -> (i32, i32, i32) {
    %c0_i32 = arith.constant 0 : i32
    %c0_i32_0 = arith.constant 0 : i32
    return %arg0, %arg1, %c0_i32 : i32, i32, i32
  }
}

</mosaic_0001>

<llo_original>
// kernel: tpu_custom_call.1
$region0: #{tpu_custom_call.1}
  #allocation0 [shape = 'u32[]', space=smem, size = 0x4, offset = 0x4, fixed_abs, tag = 'smem constant byte address 0x4 - core index']
  #allocation1 [shape = 'u32[72,128]{1,0:T(1,128)}', space=vmem, size = 0x9000, scoped, tag = 'internal scratch']
  %s0 = inlined_call_operand.hbm [shape: f32[2,4,256], index: 0, kind: input, shape index: {}]
  %s1 = inlined_call_operand.hbm [shape: f32[25,256], index: 1, kind: input, shape index: {}]
  %s2 = inlined_call_operand.vmem [shape: f32[4,25], index: 2, kind: input, shape index: {}]
  %s3 = inlined_call_operand.vmem [shape: f32[4,1], index: 3, kind: input, shape index: {}]
  %s4 = inlined_call_operand.vmem [shape: f32[4,1], index: 4, kind: input, shape index: {}]
  %s5 = inlined_call_operand.vmem [shape: f32[2,4,1], index: 5, kind: output, shape index: {}]
  %s6 = sld [smem:[#allocation0]]
  $region61: #{tpu_custom_call.1} parent=0
    _
  %s8 = ssub.s32 1, %s6
  %s9 = scalar_select 0, %s8, %s6
  $region1: #{tpu_custom_call.1} parent=0
    #allocation2 [shape = 'u8[8192]{0}', space=vmem, size = 0x2000, scoped, tag = 'input window, operand 0']
    #allocation3 [shape = 's32[2]{0}', space=sflag, size = 0x8, scoped, tag = 'scoped memory for tpu_custom_call.1']
    #allocation4 [shape = 'u8[32768]{0}', space=vmem, size = 0x8000, scoped, tag = 'input window, operand 1, single buffered']
    #allocation5 [shape = 's32[1]{0}', space=sflag, size = 0x4, scoped, tag = 'scoped memory for tpu_custom_call.1']
    %10 = vsyncpa [#allocation3], 0
    %s11 = scalar_lea.sflag [#allocation3], 1
    %12 = vsyncpa %s11, 0
    %13 = vsyncpa [#allocation5], 0
    loop: start=0, step=1, limit=4
    $region2: #{tpu_custom_call.1} parent=1 // loop_pre_header
      _
    $region3: #{tpu_custom_call.1} parent=1 // loop_header
      %s15 = sphi 0, %s19
      %p16 = scmp.ge.s32.totalorder %s15, 4
      %s22 = sphi 0, %s34
      %s23 = sphi 0, %s30
      %s24 = sphi 0, %s22
      %s25 = sphi 0, %s23
      %s26 = sphi 0, %s24
      %s27 = sphi 0, %s25
      %s39 = sphi 0, %s41
      %s42 = sphi 0, %s39
      %s43 = sphi 0, %s42
      %s59 = sphi 0, %s43
      %s63 = sphi 0, %s63
      %s65 = sphi 0, %s63
      %s66 = sphi 0, %s65
      %s80 = sphi 0, %s66
      %s86 = sphi 0, %s88
      %s89 = sphi 0, %s86
      %s90 = sphi 0, %s89
      %s106 = sphi 0, %s90
      %s112 = sphi 0, %s114
      %s115 = sphi 0, %s112
      %s116 = sphi 0, %s115
      %s132 = sphi 0, %s116
      %s138 = sphi 0, %s140
      %s141 = sphi 0, %s138
      %s142 = sphi 0, %s141
      %s158 = sphi 0, %s142
      %s166 = sphi 0, %s168
      %s169 = sphi 0, %s166
      %s170 = sphi 0, %s169
      %s186 = sphi 0, %s170
    $region4: #{tpu_custom_call.1} parent=1 // loop_header_branch
      %18 = sbr.rel (%p16) target = $region8
    $region5: #{tpu_custom_call.1} parent=1 // loop_body
      %s20 = ssub.s32 %s15, 1
      %s21 = ssub.s32 %s15, 2
      %s28 = sadd.s32 1, %s23
      %p29 = scmp.ge.s32.totalorder %s28, 1
      %s30 = scalar_select %p29, 0, %s28
      %s31 = sadd.s32 1, %s22
      %s32 = scalar_select %p29, %s31, %s22
      %p33 = scmp.ge.s32.totalorder %s32, 2
      %s34 = scalar_select %p33, 0, %s32
      %s35 = ssub.s32 %s22, %s34
      %s36 = ssub.s32 %s23, %s30
      %s37 = sor.u32 %s35, %s36
      %p38 = scmp.eq.s32.totalorder %s37, 0
      %s40 = sadd.s32 %s39, 1
      %s41 = scalar_select %p38, %s39, %s40
      %p44 = pneg %p38
      %p45 = scmp.eq.s32.totalorder %s15, 1
      %p46 = por %p44, %p45
      %p47 = scmp.ne.s32.totalorder %s39, %s42
      %p48 = scmp.eq.s32.totalorder %s15, 0
      %p49 = por %p47, %p48
      %p50 = scmp.ne.s32.totalorder %s39, %s42
      %p51 = scmp.eq.s32.totalorder %s20, 1
      %p52 = por %p50, %p51
      %p53 = scmp.ne.s32.totalorder %s42, %s43
      %p54 = scmp.eq.s32.totalorder %s20, 0
      %p55 = por %p53, %p54
      %p56 = scmp.ne.s32.totalorder %s42, %s43
      %p57 = scmp.eq.s32.totalorder %s21, 1
      %p58 = por %p56, %p57
      %p60 = scmp.ne.s32.totalorder %s43, %s59
      %p61 = scmp.eq.s32.totalorder %s21, 0
      %p62 = por %p60, %p61
      %s64 = sadd.s32 %s63, 1
      %p67 = scmp.eq.s32.totalorder %s15, 1
      %p68 = scmp.ne.s32.totalorder %s63, %s65
      %p69 = scmp.eq.s32.totalorder %s15, 0
      %p70 = por %p68, %p69
      %p71 = scmp.ne.s32.totalorder %s63, %s65
      %p72 = scmp.eq.s32.totalorder %s20, 1
      %p73 = por %p71, %p72
      %p74 = scmp.ne.s32.totalorder %s65, %s66
      %p75 = scmp.eq.s32.totalorder %s20, 0
      %p76 = por %p74, %p75
      %p77 = scmp.ne.s32.totalorder %s65, %s66
      %p78 = scmp.eq.s32.totalorder %s21, 1
      %p79 = por %p77, %p78
      %p81 = scmp.ne.s32.totalorder %s66, %s80
      %p82 = scmp.eq.s32.totalorder %s21, 0
      %p83 = por %p81, %p82
      %s84 = ssub.s32 %s23, %s30
      %p85 = scmp.eq.s32.totalorder %s84, 0
      %s87 = sadd.s32 %s86, 1
      %s88 = scalar_select %p85, %s86, %s87
      %p91 = pneg %p85
      %p92 = scmp.eq.s32.totalorder %s15, 1
      %p93 = por %p91, %p92
      %p94 = scmp.ne.s32.totalorder %s86, %s89
      %p95 = scmp.eq.s32.totalorder %s15, 0
      %p96 = por %p94, %p95
      %p97 = scmp.ne.s32.totalorder %s86, %s89
      %p98 = scmp.eq.s32.totalorder %s20, 1
      %p99 = por %p97, %p98
      %p100 = scmp.ne.s32.totalorder %s89, %s90
      %p101 = scmp.eq.s32.totalorder %s20, 0
      %p102 = por %p100, %p101
      %p103 = scmp.ne.s32.totalorder %s89, %s90
      %p104 = scmp.eq.s32.totalorder %s21, 1
      %p105 = por %p103, %p104
      %p107 = scmp.ne.s32.totalorder %s90, %s106
      %p108 = scmp.eq.s32.totalorder %s21, 0
      %p109 = por %p107, %p108
      %s110 = ssub.s32 %s23, %s30
      %p111 = scmp.eq.s32.totalorder %s110, 0
      %s113 = sadd.s32 %s112, 1
      %s114 = scalar_select %p111, %s112, %s113
      %p117 = pneg %p111
      %p118 = scmp.eq.s32.totalorder %s15, 1
      %p119 = por %p117, %p118
      %p120 = scmp.ne.s32.totalorder %s112, %s115
      %p121 = scmp.eq.s32.totalorder %s15, 0
      %p122 = por %p120, %p121
      %p123 = scmp.ne.s32.totalorder %s112, %s115
      %p124 = scmp.eq.s32.totalorder %s20, 1
      %p125 = por %p123, %p124
      %p126 = scmp.ne.s32.totalorder %s115, %s116
      %p127 = scmp.eq.s32.totalorder %s20, 0
      %p128 = por %p126, %p127
      %p129 = scmp.ne.s32.totalorder %s115, %s116
      %p130 = scmp.eq.s32.totalorder %s21, 1
      %p131 = por %p129, %p130
      %p133 = scmp.ne.s32.totalorder %s116, %s132
      %p134 = scmp.eq.s32.totalorder %s21, 0
      %p135 = por %p133, %p134
      %s136 = ssub.s32 %s23, %s30
      %p137 = scmp.eq.s32.totalorder %s136, 0
      %s139 = sadd.s32 %s138, 1
      %s140 = scalar_select %p137, %s138, %s139
      %p143 = pneg %p137
      %p144 = scmp.eq.s32.totalorder %s15, 1
      %p145 = por %p143, %p144
      %p146 = scmp.ne.s32.totalorder %s138, %s141
      %p147 = scmp.eq.s32.totalorder %s15, 0
      %p148 = por %p146, %p147
      %p149 = scmp.ne.s32.totalorder %s138, %s141
      %p150 = scmp.eq.s32.totalorder %s20, 1
      %p151 = por %p149, %p150
      %p152 = scmp.ne.s32.totalorder %s141, %s142
      %p153 = scmp.eq.s32.totalorder %s20, 0
      %p154 = por %p152, %p153
      %p155 = scmp.ne.s32.totalorder %s141, %s142
      %p156 = scmp.eq.s32.totalorder %s21, 1
      %p157 = por %p155, %p156
      %p159 = scmp.ne.s32.totalorder %s142, %s158
      %p160 = scmp.eq.s32.totalorder %s21, 0
      %p161 = por %p159, %p160
      %s162 = ssub.s32 %s22, %s34
      %s163 = ssub.s32 %s23, %s30
      %s164 = sor.u32 %s162, %s163
      %p165 = scmp.eq.s32.totalorder %s164, 0
      %s167 = sadd.s32 %s166, 1
      %s168 = scalar_select %p165, %s166, %s167
      %p171 = pneg %p165
      %p172 = scmp.eq.s32.totalorder %s15, 1
      %p173 = por %p171, %p172
      %p174 = scmp.ne.s32.totalorder %s166, %s169
      %p175 = scmp.eq.s32.totalorder %s15, 0
      %p176 = por %p174, %p175
      %p177 = scmp.ne.s32.totalorder %s166, %s169
      %p178 = scmp.eq.s32.totalorder %s20, 1
      %p179 = por %p177, %p178
      %p180 = scmp.ne.s32.totalorder %s169, %s170
      %p181 = scmp.eq.s32.totalorder %s20, 0
      %p182 = por %p180, %p181
      %p183 = scmp.ne.s32.totalorder %s169, %s170
      %p184 = scmp.eq.s32.totalorder %s21, 1
      %p185 = por %p183, %p184
      %p187 = scmp.ne.s32.totalorder %s170, %s186
      %p188 = scmp.eq.s32.totalorder %s21, 0
      %p189 = por %p187, %p188
      %p190 = scmp.le.s32.totalorder 1, %s15
      %p191 = scmp.lt.s32.totalorder %s15, 3
      %p192 = pnand %p190, %p191
      %p193 = pneg %p192
      // Predicated region
      $region9: #{tpu_custom_call.1} parent=5 // pred_check
        _
      $region10: #{tpu_custom_call.1} parent=5 // pred_check_branch
        %195 = sbr.rel (%p192) target = $region12
      $region11: #{tpu_custom_call.1} parent=5 // pred_region
        %s196 = ssub.s32 %s15, 1
        // Predicated region
        $region13: #{tpu_custom_call.1} parent=11 // pred_check
          %p197 = pneg %p76
        $region14: #{tpu_custom_call.1} parent=11 // pred_check_branch
          %199 = sbr.rel (%p197) target = $region16
        $region15: #{tpu_custom_call.1} parent=11 // pred_region
          %201 = vsyncadd [#allocation5], 0
          %s202 = sshll.u32 %s1, 4
          %s203 = int_to_ptr.hbm [resolvable:$true] %s202
          %s204 = sshll.u32 [#allocation4], 4
          %s205 = int_to_ptr.vmem [resolvable:$true] %s204
          %210 = dma.hbm_to_vmem [thread:$0]  %s203, 1024, %s205, [#allocation5], 256, 256, 16
        $region16: #{tpu_custom_call.1} parent=11 // pred_fallthru
          _
        // Predicated region
        $region17: #{tpu_custom_call.1} parent=11 // pred_check
          %p211 = pneg %p102
        $region18: #{tpu_custom_call.1} parent=11 // pred_check_branch
          %213 = sbr.rel (%p211) target = $region20
        $region19: #{tpu_custom_call.1} parent=11 // pred_region
          %p214 = scmp.lt.s32.totalorder %s25, 0
          %s215 = scalar_select %p214, %s25, 0
          %s216 = smul.addr %s215, 4
          %s217 = scalar_lea.vmem %s2, %s216
        $region20: #{tpu_custom_call.1} parent=11 // pred_fallthru
          _
        // Predicated region
        $region21: #{tpu_custom_call.1} parent=11 // pred_check
          %p218 = pneg %p128
        $region22: #{tpu_custom_call.1} parent=11 // pred_check_branch
          %220 = sbr.rel (%p218) target = $region24
        $region23: #{tpu_custom_call.1} parent=11 // pred_region
          %p221 = scmp.lt.s32.totalorder %s25, 0
          %s222 = scalar_select %p221, %s25, 0
          %s223 = smul.addr %s222, 4
          %s224 = scalar_lea.vmem %s3, %s223
        $region24: #{tpu_custom_call.1} parent=11 // pred_fallthru
          _
        // Predicated region
        $region25: #{tpu_custom_call.1} parent=11 // pred_check
          %p225 = pneg %p154
        $region26: #{tpu_custom_call.1} parent=11 // pred_check_branch
          %227 = sbr.rel (%p225) target = $region28
        $region27: #{tpu_custom_call.1} parent=11 // pred_region
          %p228 = scmp.lt.s32.totalorder %s25, 0
          %s229 = scalar_select %p228, %s25, 0
          %s230 = smul.addr %s229, 4
          %s231 = scalar_lea.vmem %s4, %s230
        $region28: #{tpu_custom_call.1} parent=11 // pred_fallthru
          _
      $region12: #{tpu_custom_call.1} parent=5 // pred_fallthru
        _
      %p232 = scmp.lt.s32.totalorder %s15, 2
      // Predicated region
      $region29: #{tpu_custom_call.1} parent=5 // pred_check
        %p233 = pneg %p232
      $region30: #{tpu_custom_call.1} parent=5 // pred_check_branch
        %235 = sbr.rel (%p233) target = $region32
      $region31: #{tpu_custom_call.1} parent=5 // pred_region
        // Predicated region
        $region33: #{tpu_custom_call.1} parent=31 // pred_check
          %p236 = pneg %p49
        $region34: #{tpu_custom_call.1} parent=31 // pred_check_branch
          %238 = sbr.rel (%p236) target = $region36
        $region35: #{tpu_custom_call.1} parent=31 // pred_region
          %s239 = sand.u32 %s39, 1
          %s240 = scalar_lea.sflag [#allocation3], %s239
          %s241 = sand.u32 %s39, 1
          %s242 = smul.addr %s241, 8
          %s243 = scalar_lea.vmem [#allocation2], %s242
          %245 = vsyncadd %s240, 0
          %s246 = smul.addr %s23, 2
          %s247 = smul.addr %s22, 2
          %s248 = sadd.s32 %s246, %s247
          %s249 = smul.addr %s248, 4
          %s250 = scalar_lea.hbm %s0, %s249
          %s252 = sshll.u32 %s250, 4
          %s253 = int_to_ptr.hbm [resolvable:$true] %s252
          %s254 = sshll.u32 %s243, 4
          %s255 = int_to_ptr.vmem [resolvable:$true] %s254
          %257 = dma.hbm_to_vmem [thread:$0]  %s253, 128, %s255, %s240
        $region36: #{tpu_custom_call.1} parent=31 // pred_fallthru
          _
      $region32: #{tpu_custom_call.1} parent=5 // pred_fallthru
        _
      %p258 = scmp.le.s32.totalorder 1, %s15
      %p259 = scmp.lt.s32.totalorder %s15, 3
      %p260 = pnand %p258, %p259
      %p261 = pneg %p260
      // Predicated region
      $region37: #{tpu_custom_call.1} parent=5 // pred_check
        _
      $region38: #{tpu_custom_call.1} parent=5 // pred_check_branch
        %263 = sbr.rel (%p260) target = $region40
      $region39: #{tpu_custom_call.1} parent=5 // pred_region
        %s264 = ssub.s32 %s15, 1
        %s265 = sand.u32 %s42, 1
        %s266 = scalar_lea.sflag [#allocation3], %s265
        %s267 = sand.u32 %s42, 1
        %s268 = smul.addr %s267, 8
        %s269 = scalar_lea.vmem [#allocation2], %s268
        // Predicated region
        $region41: #{tpu_custom_call.1} parent=39 // pred_check
          %p270 = pneg %p55
        $region42: #{tpu_custom_call.1} parent=39 // pred_check_branch
          %272 = sbr.rel (%p270) target = $region44
        $region43: #{tpu_custom_call.1} parent=39 // pred_region
          %274 = dma.done %s266, 128
        $region44: #{tpu_custom_call.1} parent=39 // pred_fallthru
          _
        // Predicated region
        $region45: #{tpu_custom_call.1} parent=39 // pred_check
          %p275 = pneg %p76
        $region46: #{tpu_custom_call.1} parent=39 // pred_check_branch
          %277 = sbr.rel (%p275) target = $region48
        $region47: #{tpu_custom_call.1} parent=39 // pred_region
          %279 = dma.done [#allocation5], 1024
        $region48: #{tpu_custom_call.1} parent=39 // pred_fallthru
          _
        %s280 = sand.u32 %s42, 1
        %s281 = scalar_lea.sflag [#allocation3], %s280
        %s282 = sand.u32 %s42, 1
        %s283 = smul.addr %s282, 8
        %s284 = scalar_lea.vmem [#allocation2], %s283
        %p285 = pneg %p55
        %p286 = pneg %p52
        %p287 = pneg %p76
        %p288 = pneg %p73
        %p289 = scmp.lt.s32.totalorder %s25, 0
        %s290 = scalar_select %p289, %s25, 0
        %s291 = smul.addr %s290, 4
        %s292 = scalar_lea.vmem %s2, %s291
        %p293 = pneg %p102
        %p294 = pneg %p99
        %p295 = scmp.lt.s32.totalorder %s25, 0
        %s296 = scalar_select %p295, %s25, 0
        %s297 = smul.addr %s296, 4
        %s298 = scalar_lea.vmem %s3, %s297
        %p299 = pneg %p128
        %p300 = pneg %p125
        %p301 = scmp.lt.s32.totalorder %s25, 0
        %s302 = scalar_select %p301, %s25, 0
        %s303 = smul.addr %s302, 4
        %s304 = scalar_lea.vmem %s4, %s303
        %p305 = pneg %p154
        %p306 = pneg %p151
        %p307 = pneg %p182
        %p308 = pneg %p179
        %p309 = scmp.lt.s32.totalorder %s24, 1
        %s310 = scalar_select %p309, %s24, 1
        %p311 = scmp.lt.s32.totalorder %s25, 0
        %s312 = scalar_select %p311, %s25, 0
        %s313 = sadd.s32 %s312, %s310
        %s314 = smul.addr %s313, 4
        %s315 = scalar_lea.vmem %s5, %s314
        %p316 = scmp.lt.s32.totalorder %s25, 0
        %s317 = scalar_select %p316, %s25, 0
        %s318 = smul.addr %s317, 4
        %s319 = scalar_lea.vmem %s2, %s318
        %p320 = scmp.lt.s32.totalorder %s25, 0
        %s321 = scalar_select %p320, %s25, 0
        %s322 = smul.addr %s321, 4
        %s323 = scalar_lea.vmem %s3, %s322
        %p324 = scmp.lt.s32.totalorder %s25, 0
        %s325 = scalar_select %p324, %s25, 0
        %s326 = smul.addr %s325, 4
        %s327 = scalar_lea.vmem %s4, %s326
        %p328 = scmp.lt.s32.totalorder %s24, 1
        %s329 = scalar_select %p328, %s24, 1
        %p330 = scmp.lt.s32.totalorder %s25, 0
        %s331 = scalar_select %p330, %s25, 0
        %s332 = sadd.s32 %s331, %s329
        %s333 = smul.addr %s332, 4
        %s334 = scalar_lea.vmem %s5, %s333
        %v335 = vld [vmem:[%s269] sm:$0xff]
        %v336 = vld [vmem:[%s319] sm:$0xf]
        %338 = vset.pattern.permute.xlu0 12
        %339 = vperm.xlu0 %338, %v336
        %v340 = vpop.permute.xlu0 %339
        %v342 = vunpack.c.l.s4 839922192
        %v343 = vunpack.c.0.s8 %v342
        %v344 = vperm.slane %v340, %v343
        %v346 = vmul.f32 %v335, %v344
        %348 = vst [vmem:[#allocation1] ss:$2 sm:$0xff] %v335
        %v349 = vld.sshfl [vmem:[#allocation1] sm:$0xff pattern:$0x75316420]
        %v350 = vld.sshfl [vmem:[#allocation1 + $0x8] sm:$0xff pattern:$0x75316420]
        %353 = vrot.lane.b32.xlu0 %v349, 34
        %v354 = vpop.permute.xlu0 %353
        %355 = vrot.lane.b32.xlu0 %v350, 34
        %v356 = vpop.permute.xlu0 %355
        %v357 = vlaneseq
        %v358 = vand.u32 %v357, 127
        %vm359 = vcmp.lt.s32.totalorder %v358, 34
        %v360 = vsel %vm359, %v354, %v356
        %v361 = vsel %vm359, %v356, %v354
        %v362 = vld [vmem:[#allocation4] ss:$8 sm:$0x3]
        %v363 = vld [vmem:[%s319] sm:$0xf]
        %v365 = vperm.slane %v362, 0
        %v366 = vperm.slane %v362, 1
        %v369 = vmul.f32 %v361, %v365
        %v370 = vmul.f32 %v360, %v366
        %372 = vset.pattern.permute.xlu0 0
        %373 = vperm.xlu0 %372, %v363
        %v374 = vpop.permute.xlu0 %373
        %v376 = vmul.f32 %v369, %v374
        %v377 = vmul.f32 %v370, %v374
        %v380 = vrot.slane %v377, 4
        %vm381 = vcmask 1043456
        %v382 = vsel %vm381, %v376, %v380
        %v384 = vadd.f32 %v346, %v382
        %385 = vst [vmem:[#allocation1] ss:$2 sm:$0xff] %v335
        %v386 = vld.sshfl [vmem:[#allocation1] sm:$0xff pattern:$0x75316420]
        %v387 = vld.sshfl [vmem:[#allocation1 + $0x8] sm:$0xff pattern:$0x75316420]
        %390 = vrot.lane.b32.xlu0 %v386, 33
        %v391 = vpop.permute.xlu0 %390
        %392 = vrot.lane.b32.xlu0 %v387, 33
        %v393 = vpop.permute.xlu0 %392
        %vm394 = vcmp.lt.s32.totalorder %v358, 33
        %v395 = vsel %vm394, %v391, %v393
        %v396 = vsel %vm394, %v393, %v391
        %s397 = scalar_lea.vmem [#allocation4], 1
        %v398 = vld [vmem:[%s397] ss:$8 sm:$0x3]
        %v399 = vld [vmem:[%s319] sm:$0xf]
        %v401 = vperm.slane %v398, 0
        %v402 = vperm.slane %v398, 1
        %v405 = vmul.f32 %v396, %v401
        %v406 = vmul.f32 %v395, %v402
        %408 = vset.pattern.permute.xlu0 1
        %409 = vperm.xlu0 %408, %v399
        %v410 = vpop.permute.xlu0 %409
        %v412 = vmul.f32 %v405, %v410
        %v413 = vmul.f32 %v406, %v410
        %v416 = vrot.slane %v413, 4
        %v417 = vsel %vm381, %v412, %v416
        %v419 = vadd.f32 %v384, %v417
        %420 = vst [vmem:[#allocation1] ss:$2 sm:$0xff] %v335
        %v421 = vld.sshfl [vmem:[#allocation1] sm:$0xff pattern:$0x75316420]
        %v422 = vld.sshfl [vmem:[#allocation1 + $0x8] sm:$0xff pattern:$0x75316420]
        %425 = vrot.lane.b32.xlu0 %v421, 32
        %v426 = vpop.permute.xlu0 %425
        %427 = vrot.lane.b32.xlu0 %v422, 32
        %v428 = vpop.permute.xlu0 %427
        %vm429 = vcmp.lt.s32.totalorder %v358, 32
        %v430 = vsel %vm429, %v426, %v428
        %v431 = vsel %vm429, %v428, %v426
        %s432 = scalar_lea.vmem [#allocation4], 2
        %v433 = vld [vmem:[%s432] ss:$8 sm:$0x3]
        %v434 = vld [vmem:[%s319] sm:$0xf]
        %v436 = vperm.slane %v433, 0
        %v437 = vperm.slane %v433, 1
        %v440 = vmul.f32 %v431, %v436
        %v441 = vmul.f32 %v430, %v437
        %443 = vset.pattern.permute.xlu0 2
        %444 = vperm.xlu0 %443, %v434
        %v445 = vpop.permute.xlu0 %444
        %v447 = vmul.f32 %v440, %v445
        %v448 = vmul.f32 %v441, %v445
        %v451 = vrot.slane %v448, 4
        %v452 = vsel %vm381, %v447, %v451
        %v454 = vadd.f32 %v419, %v452
        %455 = vst [vmem:[#allocation1] ss:$2 sm:$0xff] %v335
        %v456 = vld.sshfl [vmem:[#allocation1] sm:$0xff pattern:$0x75316420]
        %v457 = vld.sshfl [vmem:[#allocation1 + $0x8] sm:$0xff pattern:$0x75316420]
        %460 = vrot.lane.b32.xlu0 %v456, 31
        %v461 = vpop.permute.xlu0 %460
        %462 = vrot.lane.b32.xlu0 %v457, 31
        %v463 = vpop.permute.xlu0 %462
        %vm464 = vcmp.lt.s32.totalorder %v358, 31
        %v465 = vsel %vm464, %v461, %v463
        %v466 = vsel %vm464, %v463, %v461
        %s467 = scalar_lea.vmem [#allocation4], 3
        %v468 = vld [vmem:[%s467] ss:$8 sm:$0x3]
        %v469 = vld [vmem:[%s319] sm:$0xf]
        %v471 = vperm.slane %v468, 0
        %v472 = vperm.slane %v468, 1
        %v475 = vmul.f32 %v466, %v471
        %v476 = vmul.f32 %v465, %v472
        %478 = vset.pattern.permute.xlu0 3
        %479 = vperm.xlu0 %478, %v469
        %v480 = vpop.permute.xlu0 %479
        %v482 = vmul.f32 %v475, %v480
        %v483 = vmul.f32 %v476, %v480
        %v486 = vrot.slane %v483, 4
        %v487 = vsel %vm381, %v482, %v486
        %v489 = vadd.f32 %v454, %v487
        %490 = vst [vmem:[#allocation1] ss:$2 sm:$0xff] %v335
        %v491 = vld.sshfl [vmem:[#allocation1] sm:$0xff pattern:$0x75316420]
        %v492 = vld.sshfl [vmem:[#allocation1 + $0x8] sm:$0xff pattern:$0x75316420]
        %495 = vrot.lane.b32.xlu0 %v491, 30
        %v496 = vpop.permute.xlu0 %495
        %497 = vrot.lane.b32.xlu0 %v492, 30
        %v498 = vpop.permute.xlu0 %497
        %vm499 = vcmp.lt.s32.totalorder %v358, 30
        %v500 = vsel %vm499, %v496, %v498
        %v501 = vsel %vm499, %v498, %v496
        %s502 = scalar_lea.vmem [#allocation4], 4
        %v503 = vld [vmem:[%s502] ss:$8 sm:$0x3]
        %v504 = vld [vmem:[%s319] sm:$0xf]
        %v506 = vperm.slane %v503, 0
        %v507 = vperm.slane %v503, 1
        %v510 = vmul.f32 %v501, %v506
        %v511 = vmul.f32 %v500, %v507
        %513 = vset.pattern.permute.xlu0 4
        %514 = vperm.xlu0 %513, %v504
        %v515 = vpop.permute.xlu0 %514
        %v517 = vmul.f32 %v510, %v515
        %v518 = vmul.f32 %v511, %v515
        %v521 = vrot.slane %v518, 4
        %v522 = vsel %vm381, %v517, %v521
        %v524 = vadd.f32 %v489, %v522
        %525 = vst [vmem:[#allocation1] ss:$2 sm:$0xff] %v335
        %v526 = vld.sshfl [vmem:[#allocation1] sm:$0xff pattern:$0x75316420]
        %v527 = vld.sshfl [vmem:[#allocation1 + $0x8] sm:$0xff pattern:$0x75316420]
        %530 = vrot.lane.b32.xlu0 %v526, 18
        %v531 = vpop.permute.xlu0 %530
        %532 = vrot.lane.b32.xlu0 %v527, 18
        %v533 = vpop.permute.xlu0 %532
        %vm534 = vcmp.lt.s32.totalorder %v358, 18
        %v535 = vsel %vm534, %v531, %v533
        %v536 = vsel %vm534, %v533, %v531
        %s537 = scalar_lea.vmem [#allocation4], 5
        %v538 = vld [vmem:[%s537] ss:$8 sm:$0x3]
        %v539 = vld [vmem:[%s319] sm:$0xf]
        %v541 = vperm.slane %v538, 0
        %v542 = vperm.slane %v538, 1
        %v545 = vmul.f32 %v536, %v541
        %v546 = vmul.f32 %v535, %v542
        %548 = vset.pattern.permute.xlu0 5
        %549 = vperm.xlu0 %548, %v539
        %v550 = vpop.permute.xlu0 %549
        %v552 = vmul.f32 %v545, %v550
        %v553 = vmul.f32 %v546, %v550
        %v556 = vrot.slane %v553, 4
        %v557 = vsel %vm381, %v552, %v556
        %v559 = vadd.f32 %v524, %v557
        %560 = vst [vmem:[#allocation1] ss:$2 sm:$0xff] %v335
        %v561 = vld.sshfl [vmem:[#allocation1] sm:$0xff pattern:$0x75316420]
        %v562 = vld.sshfl [vmem:[#allocation1 + $0x8] sm:$0xff pattern:$0x75316420]
        %565 = vrot.lane.b32.xlu0 %v561, 17
        %v566 = vpop.permute.xlu0 %565
        %567 = vrot.lane.b32.xlu0 %v562, 17
        %v568 = vpop.permute.xlu0 %567
        %vm569 = vcmp.lt.s32.totalorder %v358, 17
        %v570 = vsel %vm569, %v566, %v568
        %v571 = vsel %vm569, %v568, %v566
        %s572 = scalar_lea.vmem [#allocation4], 6
        %v573 = vld [vmem:[%s572] ss:$8 sm:$0x3]
        %v574 = vld [vmem:[%s319] sm:$0xf]
        %v576 = vperm.slane %v573, 0
        %v577 = vperm.slane %v573, 1
        %v580 = vmul.f32 %v571, %v576
        %v581 = vmul.f32 %v570, %v577
        %583 = vset.pattern.permute.xlu0 6
        %584 = vperm.xlu0 %583, %v574
        %v585 = vpop.permute.xlu0 %584
        %v587 = vmul.f32 %v580, %v585
        %v588 = vmul.f32 %v581, %v585
        %v591 = vrot.slane %v588, 4
        %v592 = vsel %vm381, %v587, %v591
        %v594 = vadd.f32 %v559, %v592
        %595 = vst [vmem:[#allocation1] ss:$2 sm:$0xff] %v335
        %v596 = vld.sshfl [vmem:[#allocation1] sm:$0xff pattern:$0x75316420]
        %v597 = vld.sshfl [vmem:[#allocation1 + $0x8] sm:$0xff pattern:$0x75316420]
        %600 = vrot.lane.b32.xlu0 %v596, 16
        %v601 = vpop.permute.xlu0 %600
        %602 = vrot.lane.b32.xlu0 %v597, 16
        %v603 = vpop.permute.xlu0 %602
        %vm604 = vcmp.lt.s32.totalorder %v358, 16
        %v605 = vsel %vm604, %v601, %v603
        %v606 = vsel %vm604, %v603, %v601
        %s607 = scalar_lea.vmem [#allocation4], 7
        %v608 = vld [vmem:[%s607] ss:$8 sm:$0x3]
        %v609 = vld [vmem:[%s319] sm:$0xf]
        %v611 = vperm.slane %v608, 0
        %v612 = vperm.slane %v608, 1
        %v615 = vmul.f32 %v606, %v611
        %v616 = vmul.f32 %v605, %v612
        %618 = vset.pattern.permute.xlu0 7
        %619 = vperm.xlu0 %618, %v609
        %v620 = vpop.permute.xlu0 %619
        %v622 = vmul.f32 %v615, %v620
        %v623 = vmul.f32 %v616, %v620
        %v626 = vrot.slane %v623, 4
        %v627 = vsel %vm381, %v622, %v626
        %v629 = vadd.f32 %v594, %v627
        %630 = vst [vmem:[#allocation1] ss:$2 sm:$0xff] %v335
        %v631 = vld.sshfl [vmem:[#allocation1] sm:$0xff pattern:$0x75316420]
        %v632 = vld.sshfl [vmem:[#allocation1 + $0x8] sm:$0xff pattern:$0x75316420]
        %635 = vrot.lane.b32.xlu0 %v631, 15
        %v636 = vpop.permute.xlu0 %635
        %637 = vrot.lane.b32.xlu0 %v632, 15
        %v638 = vpop.permute.xlu0 %637
        %vm639 = vcmp.lt.s32.totalorder %v358, 15
        %v640 = vsel %vm639, %v636, %v638
        %v641 = vsel %vm639, %v638, %v636
        %s642 = scalar_lea.vmem [#allocation4], 16
        %v643 = vld [vmem:[%s642] ss:$8 sm:$0x3]
        %v644 = vld [vmem:[%s319] sm:$0xf]
        %v646 = vperm.slane %v643, 0
        %v647 = vperm.slane %v643, 1
        %v650 = vmul.f32 %v641, %v646
        %v651 = vmul.f32 %v640, %v647
        %653 = vset.pattern.permute.xlu0 8
        %654 = vperm.xlu0 %653, %v644
        %v655 = vpop.permute.xlu0 %654
        %v657 = vmul.f32 %v650, %v655
        %v658 = vmul.f32 %v651, %v655
        %v661 = vrot.slane %v658, 4
        %v662 = vsel %vm381, %v657, %v661
        %v664 = vadd.f32 %v629, %v662
        %665 = vst [vmem:[#allocation1] ss:$2 sm:$0xff] %v335
        %v666 = vld.sshfl [vmem:[#allocation1] sm:$0xff pattern:$0x75316420]
        %v667 = vld.sshfl [vmem:[#allocation1 + $0x8] sm:$0xff pattern:$0x75316420]
        %670 = vrot.lane.b32.xlu0 %v666, 14
        %v671 = vpop.permute.xlu0 %670
        %672 = vrot.lane.b32.xlu0 %v667, 14
        %v673 = vpop.permute.xlu0 %672
        %vm674 = vcmp.lt.s32.totalorder %v358, 14
        %v675 = vsel %vm674, %v671, %v673
        %v676 = vsel %vm674, %v673, %v671
        %s677 = scalar_lea.vmem [#allocation4], 17
        %v678 = vld [vmem:[%s677] ss:$8 sm:$0x3]
        %v679 = vld [vmem:[%s319] sm:$0xf]
        %v681 = vperm.slane %v678, 0
        %v682 = vperm.slane %v678, 1
        %v685 = vmul.f32 %v676, %v681
        %v686 = vmul.f32 %v675, %v682
        %688 = vset.pattern.permute.xlu0 9
        %689 = vperm.xlu0 %688, %v679
        %v690 = vpop.permute.xlu0 %689
        %v692 = vmul.f32 %v685, %v690
        %v693 = vmul.f32 %v686, %v690
        %v696 = vrot.slane %v693, 4
        %v697 = vsel %vm381, %v692, %v696
        %v699 = vadd.f32 %v664, %v697
        %700 = vst [vmem:[#allocation1] ss:$2 sm:$0xff] %v335
        %v701 = vld.sshfl [vmem:[#allocation1] sm:$0xff pattern:$0x75316420]
        %v702 = vld.sshfl [vmem:[#allocation1 + $0x8] sm:$0xff pattern:$0x75316420]
        %705 = vrot.lane.b32.xlu0 %v701, 2
        %v706 = vpop.permute.xlu0 %705
        %707 = vrot.lane.b32.xlu0 %v702, 2
        %v708 = vpop.permute.xlu0 %707
        %vm709 = vcmp.lt.s32.totalorder %v358, 2
        %v710 = vsel %vm709, %v706, %v708
        %v711 = vsel %vm709, %v708, %v706
        %s712 = scalar_lea.vmem [#allocation4], 18
        %v713 = vld [vmem:[%s712] ss:$8 sm:$0x3]
        %v714 = vld [vmem:[%s319] sm:$0xf]
        %v716 = vperm.slane %v713, 0
        %v717 = vperm.slane %v713, 1
        %v720 = vmul.f32 %v711, %v716
        %v721 = vmul.f32 %v710, %v717
        %723 = vset.pattern.permute.xlu0 10
        %724 = vperm.xlu0 %723, %v714
        %v725 = vpop.permute.xlu0 %724
        %v727 = vmul.f32 %v720, %v725
        %v728 = vmul.f32 %v721, %v725
        %v731 = vrot.slane %v728, 4
        %v732 = vsel %vm381, %v727, %v731
        %v734 = vadd.f32 %v699, %v732
        %735 = vst [vmem:[#allocation1] ss:$2 sm:$0xff] %v335
        %v736 = vld.sshfl [vmem:[#allocation1] sm:$0xff pattern:$0x75316420]
        %v737 = vld.sshfl [vmem:[#allocation1 + $0x8] sm:$0xff pattern:$0x75316420]
        %740 = vrot.lane.b32.xlu0 %v736, 1
        %v741 = vpop.permute.xlu0 %740
        %742 = vrot.lane.b32.xlu0 %v737, 1
        %v743 = vpop.permute.xlu0 %742
        %vm744 = vcmp.lt.s32.totalorder %v358, 1
        %v745 = vsel %vm744, %v741, %v743
        %v746 = vsel %vm744, %v743, %v741
        %s747 = scalar_lea.vmem [#allocation4], 19
        %v748 = vld [vmem:[%s747] ss:$8 sm:$0x3]
        %v749 = vld [vmem:[%s319] sm:$0xf]
        %v751 = vperm.slane %v748, 0
        %v752 = vperm.slane %v748, 1
        %v755 = vmul.f32 %v746, %v751
        %v756 = vmul.f32 %v745, %v752
        %758 = vset.pattern.permute.xlu0 11
        %759 = vperm.xlu0 %758, %v749
        %v760 = vpop.permute.xlu0 %759
        %v762 = vmul.f32 %v755, %v760
        %v763 = vmul.f32 %v756, %v760
        %v766 = vrot.slane %v763, 4
        %v767 = vsel %vm381, %v762, %v766
        %v769 = vadd.f32 %v734, %v767
        %770 = vst [vmem:[#allocation1] ss:$2 sm:$0xff] %v335
        %v771 = vld.sshfl [vmem:[#allocation1] sm:$0xff pattern:$0x75316420]
        %v772 = vld.sshfl [vmem:[#allocation1 + $0x8] sm:$0xff pattern:$0x75316420]
        %775 = vrot.lane.b32.xlu0 %v771, 127
        %v776 = vpop.permute.xlu0 %775
        %777 = vrot.lane.b32.xlu0 %v772, 127
        %v778 = vpop.permute.xlu0 %777
        %vm779 = vcmp.lt.s32.totalorder %v358, 127
        %v780 = vsel %vm779, %v776, %v778
        %v781 = vsel %vm779, %v778, %v776
        %s782 = scalar_lea.vmem [#allocation4], 21
        %v783 = vld [vmem:[%s782] ss:$8 sm:$0x3]
        %v784 = vld [vmem:[%s319] sm:$0xf]
        %v786 = vperm.slane %v783, 0
        %v787 = vperm.slane %v783, 1
        %v790 = vmul.f32 %v780, %v786
        %v791 = vmul.f32 %v781, %v787
        %793 = vset.pattern.permute.xlu0 13
        %794 = vperm.xlu0 %793, %v784
        %v795 = vpop.permute.xlu0 %794
        %v797 = vmul.f32 %v790, %v795
        %v798 = vmul.f32 %v791, %v795
        %v801 = vrot.slane %v798, 4
        %v802 = vsel %vm381, %v797, %v801
        %v804 = vadd.f32 %v769, %v802
        %805 = vst [vmem:[#allocation1] ss:$2 sm:$0xff] %v335
        %v806 = vld.sshfl [vmem:[#allocation1] sm:$0xff pattern:$0x75316420]
        %v807 = vld.sshfl [vmem:[#allocation1 + $0x8] sm:$0xff pattern:$0x75316420]
        %810 = vrot.lane.b32.xlu0 %v806, 126
        %v811 = vpop.permute.xlu0 %810
        %812 = vrot.lane.b32.xlu0 %v807, 126
        %v813 = vpop.permute.xlu0 %812
        %vm814 = vcmp.lt.s32.totalorder %v358, 126
        %v815 = vsel %vm814, %v811, %v813
        %v816 = vsel %vm814, %v813, %v811
        %s817 = scalar_lea.vmem [#allocation4], 22
        %v818 = vld [vmem:[%s817] ss:$8 sm:$0x3]
        %v819 = vld [vmem:[%s319] sm:$0xf]
        %v821 = vperm.slane %v818, 0
        %v822 = vperm.slane %v818, 1
        %v825 = vmul.f32 %v815, %v821
        %v826 = vmul.f32 %v816, %v822
        %828 = vset.pattern.permute.xlu0 14
        %829 = vperm.xlu0 %828, %v819
        %v830 = vpop.permute.xlu0 %829
        %v832 = vmul.f32 %v825, %v830
        %v833 = vmul.f32 %v826, %v830
        %v836 = vrot.slane %v833, 4
        %v837 = vsel %vm381, %v832, %v836
        %v839 = vadd.f32 %v804, %v837
        %840 = vst [vmem:[#allocation1] ss:$2 sm:$0xff] %v335
        %v841 = vld.sshfl [vmem:[#allocation1] sm:$0xff pattern:$0x75316420]
        %v842 = vld.sshfl [vmem:[#allocation1 + $0x8] sm:$0xff pattern:$0x75316420]
        %845 = vrot.lane.b32.xlu0 %v841, 114
        %v846 = vpop.permute.xlu0 %845
        %847 = vrot.lane.b32.xlu0 %v842, 114
        %v848 = vpop.permute.xlu0 %847
        %vm849 = vcmp.lt.s32.totalorder %v358, 114
        %v850 = vsel %vm849, %v846, %v848
        %v851 = vsel %vm849, %v848, %v846
        %s852 = scalar_lea.vmem [#allocation4], 23
        %v853 = vld [vmem:[%s852] ss:$8 sm:$0x3]
        %v854 = vld [vmem:[%s319] sm:$0xf]
        %v856 = vperm.slane %v853, 0
        %v857 = vperm.slane %v853, 1
        %v860 = vmul.f32 %v850, %v856
        %v861 = vmul.f32 %v851, %v857
        %863 = vset.pattern.permute.xlu0 15
        %864 = vperm.xlu0 %863, %v854
        %v865 = vpop.permute.xlu0 %864
        %v867 = vmul.f32 %v860, %v865
        %v868 = vmul.f32 %v861, %v865
        %v871 = vrot.slane %v868, 4
        %v872 = vsel %vm381, %v867, %v871
        %v874 = vadd.f32 %v839, %v872
        %875 = vst [vmem:[#allocation1] ss:$2 sm:$0xff] %v335
        %v876 = vld.sshfl [vmem:[#allocation1] sm:$0xff pattern:$0x75316420]
        %v877 = vld.sshfl [vmem:[#allocation1 + $0x8] sm:$0xff pattern:$0x75316420]
        %880 = vrot.lane.b32.xlu0 %v876, 113
        %v881 = vpop.permute.xlu0 %880
        %882 = vrot.lane.b32.xlu0 %v877, 113
        %v883 = vpop.permute.xlu0 %882
        %vm884 = vcmp.lt.s32.totalorder %v358, 113
        %v885 = vsel %vm884, %v881, %v883
        %v886 = vsel %vm884, %v883, %v881
        %s887 = scalar_lea.vmem [#allocation4], 32
        %v888 = vld [vmem:[%s887] ss:$8 sm:$0x3]
        %v889 = vld [vmem:[%s319] sm:$0xf]
        %v891 = vperm.slane %v888, 0
        %v892 = vperm.slane %v888, 1
        %v895 = vmul.f32 %v885, %v891
        %v896 = vmul.f32 %v886, %v892
        %898 = vset.pattern.permute.xlu0 16
        %899 = vperm.xlu0 %898, %v889
        %v900 = vpop.permute.xlu0 %899
        %v902 = vmul.f32 %v895, %v900
        %v903 = vmul.f32 %v896, %v900
        %v906 = vrot.slane %v903, 4
        %v907 = vsel %vm381, %v902, %v906
        %v909 = vadd.f32 %v874, %v907
        %910 = vst [vmem:[#allocation1] ss:$2 sm:$0xff] %v335
        %v911 = vld.sshfl [vmem:[#allocation1] sm:$0xff pattern:$0x75316420]
        %v912 = vld.sshfl [vmem:[#allocation1 + $0x8] sm:$0xff pattern:$0x75316420]
        %915 = vrot.lane.b32.xlu0 %v911, 112
        %v916 = vpop.permute.xlu0 %915
        %917 = vrot.lane.b32.xlu0 %v912, 112
        %v918 = vpop.permute.xlu0 %917
        %vm919 = vcmp.lt.s32.totalorder %v358, 112
        %v920 = vsel %vm919, %v916, %v918
        %v921 = vsel %vm919, %v918, %v916
        %s922 = scalar_lea.vmem [#allocation4], 33
        %v923 = vld [vmem:[%s922] ss:$8 sm:$0x3]
        %v924 = vld [vmem:[%s319] sm:$0xf]
        %v926 = vperm.slane %v923, 0
        %v927 = vperm.slane %v923, 1
        %v930 = vmul.f32 %v920, %v926
        %v931 = vmul.f32 %v921, %v927
        %933 = vset.pattern.permute.xlu0 17
        %934 = vperm.xlu0 %933, %v924
        %v935 = vpop.permute.xlu0 %934
        %v937 = vmul.f32 %v930, %v935
        %v938 = vmul.f32 %v931, %v935
        %v941 = vrot.slane %v938, 4
        %v942 = vsel %vm381, %v937, %v941
        %v944 = vadd.f32 %v909, %v942
        %945 = vst [vmem:[#allocation1] ss:$2 sm:$0xff] %v335
        %v946 = vld.sshfl [vmem:[#allocation1] sm:$0xff pattern:$0x75316420]
        %v947 = vld.sshfl [vmem:[#allocation1 + $0x8] sm:$0xff pattern:$0x75316420]
        %950 = vrot.lane.b32.xlu0 %v946, 111
        %v951 = vpop.permute.xlu0 %950
        %952 = vrot.lane.b32.xlu0 %v947, 111
        %v953 = vpop.permute.xlu0 %952
        %vm954 = vcmp.lt.s32.totalorder %v358, 111
        %v955 = vsel %vm954, %v951, %v953
        %v956 = vsel %vm954, %v953, %v951
        %s957 = scalar_lea.vmem [#allocation4], 34
        %v958 = vld [vmem:[%s957] ss:$8 sm:$0x3]
        %v959 = vld [vmem:[%s319] sm:$0xf]
        %v961 = vperm.slane %v958, 0
        %v962 = vperm.slane %v958, 1
        %v965 = vmul.f32 %v955, %v961
        %v966 = vmul.f32 %v956, %v962
        %968 = vset.pattern.permute.xlu0 18
        %969 = vperm.xlu0 %968, %v959
        %v970 = vpop.permute.xlu0 %969
        %v972 = vmul.f32 %v965, %v970
        %v973 = vmul.f32 %v966, %v970
        %v976 = vrot.slane %v973, 4
        %v977 = vsel %vm381, %v972, %v976
        %v979 = vadd.f32 %v944, %v977
        %980 = vst [vmem:[#allocation1] ss:$2 sm:$0xff] %v335
        %v981 = vld.sshfl [vmem:[#allocation1] sm:$0xff pattern:$0x75316420]
        %v982 = vld.sshfl [vmem:[#allocation1 + $0x8] sm:$0xff pattern:$0x75316420]
        %985 = vrot.lane.b32.xlu0 %v981, 110
        %v986 = vpop.permute.xlu0 %985
        %987 = vrot.lane.b32.xlu0 %v982, 110
        %v988 = vpop.permute.xlu0 %987
        %vm989 = vcmp.lt.s32.totalorder %v358, 110
        %v990 = vsel %vm989, %v986, %v988
        %v991 = vsel %vm989, %v988, %v986
        %s992 = scalar_lea.vmem [#allocation4], 35
        %v993 = vld [vmem:[%s992] ss:$8 sm:$0x3]
        %v994 = vld [vmem:[%s319] sm:$0xf]
        %v996 = vperm.slane %v993, 0
        %v997 = vperm.slane %v993, 1
        %v1000 = vmul.f32 %v990, %v996
        %v1001 = vmul.f32 %v991, %v997
        %1003 = vset.pattern.permute.xlu0 19
        %1004 = vperm.xlu0 %1003, %v994
        %v1005 = vpop.permute.xlu0 %1004
        %v1007 = vmul.f32 %v1000, %v1005
        %v1008 = vmul.f32 %v1001, %v1005
        %v1011 = vrot.slane %v1008, 4
        %v1012 = vsel %vm381, %v1007, %v1011
        %v1014 = vadd.f32 %v979, %v1012
        %1015 = vst [vmem:[#allocation1] ss:$2 sm:$0xff] %v335
        %v1016 = vld.sshfl [vmem:[#allocation1] sm:$0xff pattern:$0x75316420]
        %v1017 = vld.sshfl [vmem:[#allocation1 + $0x8] sm:$0xff pattern:$0x75316420]
        %1020 = vrot.lane.b32.xlu0 %v1016, 98
        %v1021 = vpop.permute.xlu0 %1020
        %1022 = vrot.lane.b32.xlu0 %v1017, 98
        %v1023 = vpop.permute.xlu0 %1022
        %vm1024 = vcmp.lt.s32.totalorder %v358, 98
        %v1025 = vsel %vm1024, %v1021, %v1023
        %v1026 = vsel %vm1024, %v1023, %v1021
        %s1027 = scalar_lea.vmem [#allocation4], 36
        %v1028 = vld [vmem:[%s1027] ss:$8 sm:$0x3]
        %v1029 = vld [vmem:[%s319] sm:$0xf]
        %v1031 = vperm.slane %v1028, 0
        %v1032 = vperm.slane %v1028, 1
        %v1035 = vmul.f32 %v1025, %v1031
        %v1036 = vmul.f32 %v1026, %v1032
        %1038 = vset.pattern.permute.xlu0 20
        %1039 = vperm.xlu0 %1038, %v1029
        %v1040 = vpop.permute.xlu0 %1039
        %v1042 = vmul.f32 %v1035, %v1040
        %v1043 = vmul.f32 %v1036, %v1040
        %v1046 = vrot.slane %v1043, 4
        %v1047 = vsel %vm381, %v1042, %v1046
        %v1049 = vadd.f32 %v1014, %v1047
        %1050 = vst [vmem:[#allocation1] ss:$2 sm:$0xff] %v335
        %v1051 = vld.sshfl [vmem:[#allocation1] sm:$0xff pattern:$0x75316420]
        %v1052 = vld.sshfl [vmem:[#allocation1 + $0x8] sm:$0xff pattern:$0x75316420]
        %1055 = vrot.lane.b32.xlu0 %v1051, 97
        %v1056 = vpop.permute.xlu0 %1055
        %1057 = vrot.lane.b32.xlu0 %v1052, 97
        %v1058 = vpop.permute.xlu0 %1057
        %vm1059 = vcmp.lt.s32.totalorder %v358, 97
        %v1060 = vsel %vm1059, %v1056, %v1058
        %v1061 = vsel %vm1059, %v1058, %v1056
        %s1062 = scalar_lea.vmem [#allocation4], 37
        %v1063 = vld [vmem:[%s1062] ss:$8 sm:$0x3]
        %v1064 = vld [vmem:[%s319] sm:$0xf]
        %v1066 = vperm.slane %v1063, 0
        %v1067 = vperm.slane %v1063, 1
        %v1070 = vmul.f32 %v1060, %v1066
        %v1071 = vmul.f32 %v1061, %v1067
        %1073 = vset.pattern.permute.xlu0 21
        %1074 = vperm.xlu0 %1073, %v1064
        %v1075 = vpop.permute.xlu0 %1074
        %v1077 = vmul.f32 %v1070, %v1075
        %v1078 = vmul.f32 %v1071, %v1075
        %v1081 = vrot.slane %v1078, 4
        %v1082 = vsel %vm381, %v1077, %v1081
        %v1084 = vadd.f32 %v1049, %v1082
        %1085 = vst [vmem:[#allocation1] ss:$2 sm:$0xff] %v335
        %v1086 = vld.sshfl [vmem:[#allocation1] sm:$0xff pattern:$0x75316420]
        %v1087 = vld.sshfl [vmem:[#allocation1 + $0x8] sm:$0xff pattern:$0x75316420]
        %1090 = vrot.lane.b32.xlu0 %v1086, 96
        %v1091 = vpop.permute.xlu0 %1090
        %1092 = vrot.lane.b32.xlu0 %v1087, 96
        %v1093 = vpop.permute.xlu0 %1092
        %vm1094 = vcmp.lt.s32.totalorder %v358, 96
        %v1095 = vsel %vm1094, %v1091, %v1093
        %v1096 = vsel %vm1094, %v1093, %v1091
        %s1097 = scalar_lea.vmem [#allocation4], 38
        %v1098 = vld [vmem:[%s1097] ss:$8 sm:$0x3]
        %v1099 = vld [vmem:[%s319] sm:$0xf]
        %v1101 = vperm.slane %v1098, 0
        %v1102 = vperm.slane %v1098, 1
        %v1105 = vmul.f32 %v1095, %v1101
        %v1106 = vmul.f32 %v1096, %v1102
        %1108 = vset.pattern.permute.xlu0 22
        %1109 = vperm.xlu0 %1108, %v1099
        %v1110 = vpop.permute.xlu0 %1109
        %v1112 = vmul.f32 %v1105, %v1110
        %v1113 = vmul.f32 %v1106, %v1110
        %v1116 = vrot.slane %v1113, 4
        %v1117 = vsel %vm381, %v1112, %v1116
        %v1119 = vadd.f32 %v1084, %v1117
        %1120 = vst [vmem:[#allocation1] ss:$2 sm:$0xff] %v335
        %v1121 = vld.sshfl [vmem:[#allocation1] sm:$0xff pattern:$0x75316420]
        %v1122 = vld.sshfl [vmem:[#allocation1 + $0x8] sm:$0xff pattern:$0x75316420]
        %1125 = vrot.lane.b32.xlu0 %v1121, 95
        %v1126 = vpop.permute.xlu0 %1125
        %1127 = vrot.lane.b32.xlu0 %v1122, 95
        %v1128 = vpop.permute.xlu0 %1127
        %vm1129 = vcmp.lt.s32.totalorder %v358, 95
        %v1130 = vsel %vm1129, %v1126, %v1128
        %v1131 = vsel %vm1129, %v1128, %v1126
        %s1132 = scalar_lea.vmem [#allocation4], 39
        %v1133 = vld [vmem:[%s1132] ss:$8 sm:$0x3]
        %v1134 = vld [vmem:[%s319] sm:$0xf]
        %v1136 = vperm.slane %v1133, 0
        %v1137 = vperm.slane %v1133, 1
        %v1140 = vmul.f32 %v1130, %v1136
        %v1141 = vmul.f32 %v1131, %v1137
        %1143 = vset.pattern.permute.xlu0 23
        %1144 = vperm.xlu0 %1143, %v1134
        %v1145 = vpop.permute.xlu0 %1144
        %v1147 = vmul.f32 %v1140, %v1145
        %v1148 = vmul.f32 %v1141, %v1145
        %v1151 = vrot.slane %v1148, 4
        %v1152 = vsel %vm381, %v1147, %v1151
        %v1154 = vadd.f32 %v1119, %v1152
        %1155 = vst [vmem:[#allocation1] ss:$2 sm:$0xff] %v335
        %v1156 = vld.sshfl [vmem:[#allocation1] sm:$0xff pattern:$0x75316420]
        %v1157 = vld.sshfl [vmem:[#allocation1 + $0x8] sm:$0xff pattern:$0x75316420]
        %1160 = vrot.lane.b32.xlu0 %v1156, 94
        %v1161 = vpop.permute.xlu0 %1160
        %1162 = vrot.lane.b32.xlu0 %v1157, 94
        %v1163 = vpop.permute.xlu0 %1162
        %vm1164 = vcmp.lt.s32.totalorder %v358, 94
        %v1165 = vsel %vm1164, %v1161, %v1163
        %v1166 = vsel %vm1164, %v1163, %v1161
        %s1167 = scalar_lea.vmem [#allocation4], 48
        %v1168 = vld [vmem:[%s1167] ss:$8 sm:$0x3]
        %v1169 = vld [vmem:[%s319] sm:$0xf]
        %v1171 = vperm.slane %v1168, 0
        %v1172 = vperm.slane %v1168, 1
        %v1175 = vmul.f32 %v1165, %v1171
        %v1176 = vmul.f32 %v1166, %v1172
        %1178 = vset.pattern.permute.xlu0 24
        %1179 = vperm.xlu0 %1178, %v1169
        %v1180 = vpop.permute.xlu0 %1179
        %v1182 = vmul.f32 %v1175, %v1180
        %v1183 = vmul.f32 %v1176, %v1180
        %v1186 = vrot.slane %v1183, 4
        %v1187 = vsel %vm381, %v1182, %v1186
        %v1189 = vadd.f32 %v1154, %v1187
        %1191 = vst [vmem:[#allocation1] ss:$2 sm:$0xff] %v1189
        %v1192 = vld.sshfl [vmem:[#allocation1] sm:$0xff pattern:$0x75316420]
        %v1193 = vld.sshfl [vmem:[#allocation1 + $0x8] sm:$0xff pattern:$0x75316420]
        %v1196 = vsel %vm381, %v1192, 0.0
        %v1197 = vsel %vm381, %v1193, 0.0
        %v1198 = vadd.f32 %v1196, %v1197
        %1199 = vadd.xlane.f32.xlu0 %v1198
        %v1200 = vpop.xlane.xlu0 %1199
        %v1201 = vmul.f32 %v1200, 0.00390625
        %v1202 = vmul.f32 %v1189, %v1189
        %1204 = vst [vmem:[#allocation1] ss:$2 sm:$0xff] %v1202
        %v1205 = vld.sshfl [vmem:[#allocation1] sm:$0xff pattern:$0x75316420]
        %v1206 = vld.sshfl [vmem:[#allocation1 + $0x8] sm:$0xff pattern:$0x75316420]
        %v1209 = vsel %vm381, %v1205, 0.0
        %v1210 = vsel %vm381, %v1206, 0.0
        %v1211 = vadd.f32 %v1209, %v1210
        %1212 = vadd.xlane.f32.xlu0 %v1211
        %v1213 = vpop.xlane.xlu0 %1212
        %v1214 = vmul.f32 %v1213, 0.00390625
        %v1215 = vmul.f32 %v1201, %v1201
        %v1216 = vsub.f32 %v1214, %v1215
        %v1217 = vadd.f32 %v1216, 1e-05
        %v1218 = vrsqrt.pop %v1217
        %v1219 = vmul.f32 %v1218, %v1217
        %v1220 = vmul.f32 %v1219, %v1218
        %v1221 = vmul.f32 0.5, %v1220
        %v1222 = vsub.f32 1.5, %v1221
        %v1223 = vmul.f32 %v1218, %v1222
        %vm1224 = vweird.f32 %v1217
        %vm1225 = vweird.f32 %v1218
        %vm1226 = vmor %vm1224, %vm1225
        %v1227 = vsel %vm1226, %v1218, %v1223
        %v1228 = vld [vmem:[%s323] sm:$0xf]
        %v1229 = vmul.f32 %v1227, %v1228
        %v1230 = vld [vmem:[%s327] sm:$0xf]
        %v1231 = vmul.f32 %v1201, %v1229
        %v1232 = vsub.f32 %v1230, %v1231
        %1234 = vset.pattern.permute.xlu0 0
        %1235 = vperm.xlu0 %1234, %v1229
        %v1236 = vpop.permute.xlu0 %1235
        %v1238 = vunpack.c.l.s4 839922192
        %v1239 = vunpack.c.0.s8 %v1238
        %v1240 = vperm.slane %v1236, %v1239
        %v1242 = vmul.f32 %v1189, %v1240
        %1244 = vset.pattern.permute.xlu0 0
        %1245 = vperm.xlu0 %1244, %v1232
        %v1246 = vpop.permute.xlu0 %1245
        %v1248 = vunpack.c.l.s4 839922192
        %v1249 = vunpack.c.0.s8 %v1248
        %v1250 = vperm.slane %v1246, %v1249
        %v1252 = vadd.f32 %v1242, %v1250
        %v1253 = vxor.u32 %v1252, 2147483648
        %v1254 = vmul.f32 %v1253, 1.442695
        %v1255 = vpow.pop %v1254
        %v1256 = vadd.f32 %v1255, 1.0
        %v1257 = vrcp.pop %v1256
        %v1258 = vmul.f32 %v1256, %v1257
        %v1259 = vsub.f32 1.0, %v1258
        %v1260 = vmul.f32 %v1257, %v1259
        %v1261 = vadd.f32 %v1257, %v1260
        %vm1262 = vweird.f32 %v1256
        %vm1263 = vweird.f32 %v1257
        %vm1264 = vmor %vm1262, %vm1263
        %v1265 = vsel %vm1264, %v1257, %v1261
        %v1266 = vand.u32 2147483647, %v1256
        %vm1267 = vcmp.eq.f32.partialorder %v1266, 8.507059e+37
        %v1268 = vand.u32 %v1256, 2147483648
        %v1269 = vor.u32 1.1754944e-38, %v1268
        %v1270 = vsel %vm1267, %v1269, %v1265
        %v1271 = vmul.f32 1.0, %v1270
        %v1272 = vmul.f32 %v1271, 12.0
        %v1273 = vmul.f32 %v1272, 1.442695
        %v1274 = vpow.pop %v1273
        %1276 = vst [vmem:[#allocation1] ss:$2 sm:$0xff] %v1274
        %v1277 = vld.sshfl [vmem:[#allocation1] sm:$0xff pattern:$0x75316420]
        %v1278 = vld.sshfl [vmem:[#allocation1 + $0x8] sm:$0xff pattern:$0x75316420]
        %v1281 = vsel %vm381, %v1277, 0.0
        %v1282 = vsel %vm381, %v1278, 0.0
        %v1283 = vadd.f32 %v1281, %v1282
        %1284 = vadd.xlane.f32.xlu0 %v1283
        %v1285 = vpop.xlane.xlu0 %1284
        %v1286 = vmul.f32 %v335, %v1274
        %1288 = vst [vmem:[#allocation1] ss:$2 sm:$0xff] %v1286
        %v1289 = vld.sshfl [vmem:[#allocation1] sm:$0xff pattern:$0x75316420]
        %v1290 = vld.sshfl [vmem:[#allocation1 + $0x8] sm:$0xff pattern:$0x75316420]
        %v1293 = vsel %vm381, %v1289, 0.0
        %v1294 = vsel %vm381, %v1290, 0.0
        %v1295 = vadd.f32 %v1293, %v1294
        %1296 = vadd.xlane.f32.xlu0 %v1295
        %v1297 = vpop.xlane.xlu0 %1296
        %v1298 = vrcp.pop %v1285
        %v1299 = vmul.f32 %v1297, %v1298
        %vm1300 = vcmask 3072
        %1301 = vst.msk [vmem:[%s334] sm:$0xf] %vm1300, %v1299
        %p1302 = scmp.lt.s32.totalorder %s24, 1
        %s1303 = scalar_select %p1302, %s24, 1
        %p1304 = scmp.lt.s32.totalorder %s25, 0
        %s1305 = scalar_select %p1304, %s25, 0
        %s1306 = sadd.s32 %s1305, %s1303
        %s1307 = smul.addr %s1306, 4
        %s1308 = scalar_lea.vmem %s5, %s1307
        // Predicated region
        $region49: #{tpu_custom_call.1} parent=39 // pred_check
          %p1309 = pneg %p179
        $region50: #{tpu_custom_call.1} parent=39 // pred_check_branch
          %1311 = sbr.rel (%p1309) target = $region52
        $region51: #{tpu_custom_call.1} parent=39 // pred_region
          _
        $region52: #{tpu_custom_call.1} parent=39 // pred_fallthru
          _
      $region40: #{tpu_custom_call.1} parent=5 // pred_fallthru
        _
      %p1312 = scmp.le.s32.totalorder 2, %s15
      // Predicated region
      $region53: #{tpu_custom_call.1} parent=5 // pred_check
        %p1313 = pneg %p1312
      $region54: #{tpu_custom_call.1} parent=5 // pred_check_branch
        %1315 = sbr.rel (%p1313) target = $region56
      $region55: #{tpu_custom_call.1} parent=5 // pred_region
        %s1316 = ssub.s32 %s15, 2
        // Predicated region
        $region57: #{tpu_custom_call.1} parent=55 // pred_check
          %p1317 = pneg %p185
        $region58: #{tpu_custom_call.1} parent=55 // pred_check_branch
          %1319 = sbr.rel (%p1317) target = $region60
        $region59: #{tpu_custom_call.1} parent=55 // pred_region
          %p1320 = scmp.lt.s32.totalorder %s26, 1
          %s1321 = scalar_select %p1320, %s26, 1
          %p1322 = scmp.lt.s32.totalorder %s27, 0
          %s1323 = scalar_select %p1322, %s27, 0
          %s1324 = sadd.s32 %s1323, %s1321
          %s1325 = smul.addr %s1324, 4
          %s1326 = scalar_lea.vmem %s5, %s1325
        $region60: #{tpu_custom_call.1} parent=55 // pred_fallthru
          _
      $region56: #{tpu_custom_call.1} parent=5 // pred_fallthru
        _
    $region6: #{tpu_custom_call.1} parent=1 // loop_footer
      %s19 = sadd.s32 1, %s15
    $region7: #{tpu_custom_call.1} parent=1 // loop_footer_branch
      %14 = sbr.rel target = $region3
    $region8: #{tpu_custom_call.1} parent=1 // loop_exit
      _
    %1327 = vsyncpa [#allocation3], 1
    %s1328 = scalar_lea.sflag [#allocation3], 1
    %1329 = vsyncpa %s1328, 1
    %1330 = vsyncpa [#allocation5], 1

</llo_original>
